<compile_context>
chip_gen: v6e
topology: v6e:2x2x1
jax: 0.10.0
libtpu: 0.0.40
codegen_flags: <defaults>
</compile_context>

<pallas_src>
import math

import jax
import jax.numpy as jnp
from jax.experimental import pallas as pl
from jax.experimental.pallas import tpu as pltpu


HIDDEN = 256

# Scoped-VMEM limit requested from the compiler: safe on all generations
# (v5e default 16 MiB / 128 phys, v6e 32 / 128, v7x 32 / 64).
VMEM_LIMIT_BYTES = 32 * 1024 * 1024
# Budget we allow the pipeline buffers to use (leave headroom for compiler
# scratch / spills under the 32 MiB scoped limit).
VMEM_PIPELINE_BUDGET = 20 * 1024 * 1024
MAX_BLOCK_B = 2048
MIN_BLOCK_B = 8


# -----------------------------------------------------------------------------
# Pallas kernel: fused actor-critic MLP (one batch tile per grid step)
# -----------------------------------------------------------------------------
def _pi_actor_critic_kernel(
    x_ref,                      # (bB, F)      native dtype (f32) observation tile
    wha1_ref, bha1_ref,         # (F, H) bf16, (1, H) f32
    wha2_ref, bha2_ref,         # (H, H) bf16, (1, H) f32
    whv2_ref, bhv2_ref,         # (H, H) bf16, (1, H) f32
    whead_ref, bhead_ref,       # (2H, A+1) bf16, (1, A+1) f32  (fused heads)
    out_ref,                    # (bB, A+1) f32 : [:, :A] = logits, [:, A:] = value
):
    H = wha2_ref.shape[0]

    # Cast to bf16 *inside* the kernel: x streams HBM->VMEM once in its
    # native dtype; no wrapper-side cast / extra HBM pass.
    x = x_ref[...].astype(jnp.bfloat16)

    # Actor trunk: two Linear + ReLU (bf16 MXU inputs, f32 accumulation).
    a1 = jnp.dot(x, wha1_ref[...], preferred_element_type=jnp.float32) + bha1_ref[...]
    a1 = jnp.maximum(a1, 0.0).astype(jnp.bfloat16)

    a2 = jnp.dot(a1, wha2_ref[...], preferred_element_type=jnp.float32) + bha2_ref[...]
    a2_b = jnp.maximum(a2, 0.0).astype(jnp.bfloat16)

    # Value feature: xv = tanh(hv2(xa)).  The module's hv1(x) is dead code
    # (its result is immediately overwritten), so it is omitted here entirely.
    xv = jnp.tanh(
        jnp.dot(a2_b, whv2_ref[...], preferred_element_type=jnp.float32) + bhv2_ref[...]
    ).astype(jnp.bfloat16)

    # Fused output heads, no concatenate: two dots on static, tile-aligned
    # slices of the block-diagonal weight accumulate into one [logits|value]
    # slab -> single lane-dense store, no (bB, 2H) VMEM copy.
    out_ref[...] = (
        jnp.dot(a2_b, whead_ref[:H, :], preferred_element_type=jnp.float32)
        + jnp.dot(xv, whead_ref[H:, :], preferred_element_type=jnp.float32)
        + bhead_ref[...]
    )


# -----------------------------------------------------------------------------
# Parameter construction (deterministic, PyTorch-default-style uniform init)
# -----------------------------------------------------------------------------
def init_params(key, state_shape, action_size, nb_features=HIDDEN):
    in_flat = int(math.prod(state_shape))

    def linear(key, fan_in, fan_out):
        kw, kb = jax.random.split(key)
        bound = 1.0 / math.sqrt(fan_in)
        w = jax.random.uniform(kw, (fan_in, fan_out), jnp.float32, -bound, bound)
        b = jax.random.uniform(kb, (1, fan_out), jnp.float32, -bound, bound)
        return w, b

    keys = jax.random.split(key, 6)
    return {
        "ha1": linear(keys[0], in_flat, nb_features),
        "ha2": linear(keys[1], nb_features, nb_features),
        "hv1": linear(keys[2], in_flat, nb_features),   # dead in the forward pass
        "hv2": linear(keys[3], nb_features, nb_features),
        "out": linear(keys[4], nb_features, action_size),
        "out_value": linear(keys[5], nb_features, 1),
    }


def prepare_kernel_params(params, action_size, nb_features=HIDDEN):
    """One-time packing: bf16 weights + fused block-diagonal output head.

    hv1 is intentionally omitted: its output is overwritten in the module's
    forward, so loading its weights would only burn HBM bandwidth.
    (int8 weight quantization of the trunk would further help v5e/v6e, but is
    not portable to v7x's fp8-only MXU; bf16 is kept for portability.)
    """
    H = nb_features
    A = action_size

    wout, bout = params["out"]          # (H, A), (1, A)
    wov, bov = params["out_value"]      # (H, 1), (1, 1)

    w_head = jnp.zeros((2 * H, A + 1), jnp.float32)
    w_head = w_head.at[:H, :A].set(wout)    # logits <- xa
    w_head = w_head.at[H:, A:].set(wov)     # value  <- xv
    b_head = jnp.concatenate([bout, bov], axis=-1)   # (1, A+1)

    return {
        "wha1": params["ha1"][0].astype(jnp.bfloat16),
        "bha1": params["ha1"][1],
        "wha2": params["ha2"][0].astype(jnp.bfloat16),
        "bha2": params["ha2"][1],
        "whv2": params["hv2"][0].astype(jnp.bfloat16),
        "bhv2": params["hv2"][1],
        "whead": w_head.astype(jnp.bfloat16),
        "bhead": b_head,
    }


# -----------------------------------------------------------------------------
# Batch-tile sizing from an explicit VMEM budget
# -----------------------------------------------------------------------------
def _choose_block_b(B, F, H, A, x_itemsize):
    # Weights/biases: default pipeline reserves 2 buffers even though the
    # constant index_maps mean they are only DMA'd once.
    weight_bytes = 2 * (
        F * H * 2                # wha1 (bf16)
        + 2 * H * H * 2          # wha2, whv2 (bf16)
        + 2 * H * (A + 1) * 2    # fused head (bf16)
        + (3 * H + (A + 1)) * 4  # biases (f32)
    )
    # Per batch row: double-buffered x tile + double-buffered out tile +
    # generous allowance for f32/bf16 activation temporaries.
    per_row = 2 * F * x_itemsize + 2 * (A + 1) * 4 + 8 * H * 4

    avail = VMEM_PIPELINE_BUDGET - weight_bytes
    cap = avail // per_row if avail > 0 else MIN_BLOCK_B
    cap = max(MIN_BLOCK_B, min(MAX_BLOCK_B, (cap // 8) * 8))

    if B <= cap:
        if B > 64:
            # Split into >= 2 tiles so the "parallel" batch axis can shard
            # across both TensorCores on v7x (neutral on 1-TC v5e/v6e).
            half = (B + 1) // 2
            return min(cap, ((half + 7) // 8) * 8)
        return B  # single full-batch tile (block == full dim is always legal)
    return cap


# -----------------------------------------------------------------------------
# Wrapper: flatten / pass-through glue + pallas_call
# -----------------------------------------------------------------------------
def pi_actor_critic_forward(x1, x2, kparams, action_size):
    B = x1.shape[0]
    F = int(math.prod(x1.shape[1:]))
    H = kparams["wha2"].shape[0]
    A = action_size

    # nn.Flatten(start_dim=1); NO dtype cast here -- the kernel casts in VMEM.
    x = x1.reshape(B, F)

    block_b = _choose_block_b(B, F, H, A, x.dtype.itemsize)
    grid = (pl.cdiv(B, block_b),)

    # Weights: full-array blocks with constant index_map -> DMA'd once and
    # kept VMEM-resident across all batch tiles.
    def const_spec(shape):
        ndim = len(shape)
        return pl.BlockSpec(shape, lambda i, _n=ndim: (0,) * _n)

    head_out = pl.pallas_call(
        _pi_actor_critic_kernel,
        out_shape=jax.ShapeDtypeStruct((B, A + 1), jnp.float32),
        grid=grid,
        in_specs=[
            pl.BlockSpec((block_b, F), lambda i: (i, 0)),        # x tile (streamed)
            const_spec((F, H)), const_spec((1, H)),              # ha1
            const_spec((H, H)), const_spec((1, H)),              # ha2
            const_spec((H, H)), const_spec((1, H)),              # hv2
            const_spec((2 * H, A + 1)), const_spec((1, A + 1)),  # fused heads
        ],
        out_specs=pl.BlockSpec((block_b, A + 1), lambda i: (i, 0)),
        compiler_params=pltpu.CompilerParams(
            dimension_semantics=("parallel",),   # batch tiles are independent
            vmem_limit_bytes=VMEM_LIMIT_BYTES,
        ),
    )(
        x,
        kparams["wha1"], kparams["bha1"],
        kparams["wha2"], kparams["bha2"],
        kparams["whv2"], kparams["bhv2"],
        kparams["whead"], kparams["bhead"],
    )

    logits = head_out[:, :A]
    value = head_out[:, A:]
    # x2 ("given advantages") is returned untouched, exactly as in PyTorch.
    return [logits, x2, value]


# -----------------------------------------------------------------------------
# Pure-JAX references for correctness checks
# -----------------------------------------------------------------------------
def reference_forward_bf16(x1, x2, kparams, action_size):
    """Mirrors the kernel's bf16-weight / f32-accumulate numerics exactly."""
    B = x1.shape[0]
    f32 = jnp.float32
    x = x1.reshape(B, -1).astype(jnp.bfloat16)
    a1 = jax.nn.relu(
        jnp.dot(x, kparams["wha1"], preferred_element_type=f32) + kparams["bha1"]
    ).astype(jnp.bfloat16)
    a2_b = jax.nn.relu(
        jnp.dot(a1, kparams["wha2"], preferred_element_type=f32) + kparams["bha2"]
    ).astype(jnp.bfloat16)
    xv = jnp.tanh(
        jnp.dot(a2_b, kparams["whv2"], preferred_element_type=f32) + kparams["bhv2"]
    ).astype(jnp.bfloat16)
    H = kparams["wha2"].shape[0]
    head = (
        jnp.dot(a2_b, kparams["whead"][:H, :], preferred_element_type=f32)
        + jnp.dot(xv, kparams["whead"][H:, :], preferred_element_type=f32)
        + kparams["bhead"]
    )
    return [head[:, :action_size], x2, head[:, action_size:]]


def reference_forward_f32(x1, x2, params):
    """Full-f32 reference faithful to the PyTorch module."""
    B = x1.shape[0]
    x = x1.reshape(B, -1).astype(jnp.float32)
    xa = jax.nn.relu(x @ params["ha1"][0] + params["ha1"][1])
    xa = jax.nn.relu(xa @ params["ha2"][0] + params["ha2"][1])
    _ = jnp.tanh(x @ params["hv1"][0] + params["hv1"][1])   # dead, as in torch
    xv = jnp.tanh(xa @ params["hv2"][0] + params["hv2"][1])
    logits = xa @ params["out"][0] + params["out"][1]
    value = xv @ params["out_value"][0] + params["out_value"][1]
    return [logits, x2, value]


if __name__ == "__main__":
    key = jax.random.PRNGKey(0)
    k_obs, k_adv, k_par = jax.random.split(key, 3)

    # Small, module-consistent shapes: observation is image-like NCHW.
    state_shape = (4, 16, 16)       # (C, H, W) -> 1024 flattened features
    action_size = 6
    batch = 8

    x1 = jax.random.normal(k_obs, (batch,) + state_shape, dtype=jnp.float32)
    x2 = jax.random.normal(k_adv, (batch,), dtype=jnp.float32)   # given advantages

    params = init_params(k_par, state_shape, action_size)
    # One-time weight packing (bf16 + fused head); reused across calls so the
    # cast/fusion cost is not paid per forward.
    kparams = prepare_kernel_params(params, action_size)

    logits, adv_out, value = pi_actor_critic_forward(x1, x2, kparams, action_size)
    jax.block_until_ready((logits, adv_out, value))

    assert logits.shape == (batch, action_size)
    assert value.shape == (batch, 1)
    assert adv_out.shape == x2.shape
    assert jnp.array_equal(adv_out, x2)

    # Tight check: same bf16 weights / f32 accumulation as the kernel.
    r_logits, _, r_value = reference_forward_bf16(x1, x2, kparams, action_size)
    assert jnp.allclose(logits, r_logits, atol=1e-2, rtol=1e-2)
    assert jnp.allclose(value, r_value, atol=1e-2, rtol=1e-2)

    # Loose check vs. the full-f32 PyTorch-style reference (difference is only
    # the intentional bf16 weight/activation rounding).
    f_logits, _, f_value = reference_forward_f32(x1, x2, params)
    assert jnp.allclose(logits, f_logits, atol=1e-1, rtol=1e-1)
    assert jnp.allclose(value, f_value, atol=1e-1, rtol=1e-1)

    print("KERNEL_OK")
</pallas_src>

<mosaic_0001>
module attributes {stable_mosaic.version = 11 : i64} {
  func.func @_pi_actor_critic_kernel(%arg0: i32, %arg1: memref<8x1024xf32, #tpu.memory_space<vmem>>, %arg2: memref<1024x256xbf16, #tpu.memory_space<vmem>>, %arg3: memref<1x256xf32, #tpu.memory_space<vmem>>, %arg4: memref<256x256xbf16, #tpu.memory_space<vmem>>, %arg5: memref<1x256xf32, #tpu.memory_space<vmem>>, %arg6: memref<256x256xbf16, #tpu.memory_space<vmem>>, %arg7: memref<1x256xf32, #tpu.memory_space<vmem>>, %arg8: memref<512x7xbf16, #tpu.memory_space<vmem>>, %arg9: memref<1x7xf32, #tpu.memory_space<vmem>>, %arg10: memref<8x7xf32, #tpu.memory_space<vmem>>) attributes {dimension_semantics = [#tpu.dimension_semantics<parallel>], iteration_bounds = array<i64: 1>, scalar_prefetch = 0 : i64, scratch_operands = 0 : i64, tpu.core_type = #tpu.core_type<tc>, window_params = [{transform_indices = @transform_0, window_bounds = array<i64: 8, 1024>}, {pipeline_mode = #tpu.pipeline_mode<synchronous>, transform_indices = @transform_1, window_bounds = array<i64: 1024, 256>}, {pipeline_mode = #tpu.pipeline_mode<synchronous>, transform_indices = @transform_2, window_bounds = array<i64: 1, 256>}, {pipeline_mode = #tpu.pipeline_mode<synchronous>, transform_indices = @transform_3, window_bounds = array<i64: 256, 256>}, {pipeline_mode = #tpu.pipeline_mode<synchronous>, transform_indices = @transform_4, window_bounds = array<i64: 1, 256>}, {pipeline_mode = #tpu.pipeline_mode<synchronous>, transform_indices = @transform_5, window_bounds = array<i64: 256, 256>}, {pipeline_mode = #tpu.pipeline_mode<synchronous>, transform_indices = @transform_6, window_bounds = array<i64: 1, 256>}, {pipeline_mode = #tpu.pipeline_mode<synchronous>, transform_indices = @transform_7, window_bounds = array<i64: 512, 7>}, {pipeline_mode = #tpu.pipeline_mode<synchronous>, transform_indices = @transform_8, window_bounds = array<i64: 1, 7>}, {transform_indices = @transform_9, window_bounds = array<i64: 8, 7>}]} {
    %c0 = arith.constant 0 : index
    %c0_0 = arith.constant 0 : index
    %0 = vector.load %arg1[%c0, %c0_0] : memref<8x1024xf32, #tpu.memory_space<vmem>>, vector<8x1024xf32>
    %1 = arith.truncf %0 : vector<8x1024xf32> to vector<8x1024xbf16>
    %c0_1 = arith.constant 0 : index
    %c0_2 = arith.constant 0 : index
    %2 = vector.load %arg2[%c0_1, %c0_2] : memref<1024x256xbf16, #tpu.memory_space<vmem>>, vector<1024x256xbf16>
    %cst = arith.constant dense<0.000000e+00> : vector<8x256xf32>
    %3 = tpu.matmul %1, %2, %cst {dimension_numbers = #tpu.dot_dimension_numbers<[1], [0], [0], [1], [0, 0, 1, 1], [], []>} : vector<8x1024xbf16>, vector<1024x256xbf16>, vector<8x256xf32> -> vector<8x256xf32>
    %c0_3 = arith.constant 0 : index
    %c0_4 = arith.constant 0 : index
    %4 = vector.load %arg3[%c0_3, %c0_4] : memref<1x256xf32, #tpu.memory_space<vmem>>, vector<1x256xf32>
    %5 = vector.broadcast %4 : vector<1x256xf32> to vector<8x256xf32>
    %6 = arith.addf %3, %5 : vector<8x256xf32>
    %cst_5 = arith.constant 0.000000e+00 : f32
    %7 = vector.broadcast %cst_5 : f32 to vector<8x256xf32>
    %8 = arith.maximumf %6, %7 : vector<8x256xf32>
    %9 = arith.truncf %8 : vector<8x256xf32> to vector<8x256xbf16>
    %c0_6 = arith.constant 0 : index
    %c0_7 = arith.constant 0 : index
    %10 = vector.load %arg4[%c0_6, %c0_7] : memref<256x256xbf16, #tpu.memory_space<vmem>>, vector<256x256xbf16>
    %cst_8 = arith.constant dense<0.000000e+00> : vector<8x256xf32>
    %11 = tpu.matmul %9, %10, %cst_8 {dimension_numbers = #tpu.dot_dimension_numbers<[1], [0], [0], [1], [0, 0, 1, 1], [], []>} : vector<8x256xbf16>, vector<256x256xbf16>, vector<8x256xf32> -> vector<8x256xf32>
    %c0_9 = arith.constant 0 : index
    %c0_10 = arith.constant 0 : index
    %12 = vector.load %arg5[%c0_9, %c0_10] : memref<1x256xf32, #tpu.memory_space<vmem>>, vector<1x256xf32>
    %13 = vector.broadcast %12 : vector<1x256xf32> to vector<8x256xf32>
    %14 = arith.addf %11, %13 : vector<8x256xf32>
    %cst_11 = arith.constant 0.000000e+00 : f32
    %15 = vector.broadcast %cst_11 : f32 to vector<8x256xf32>
    %16 = arith.maximumf %14, %15 : vector<8x256xf32>
    %17 = arith.truncf %16 : vector<8x256xf32> to vector<8x256xbf16>
    %c0_12 = arith.constant 0 : index
    %c0_13 = arith.constant 0 : index
    %18 = vector.load %arg6[%c0_12, %c0_13] : memref<256x256xbf16, #tpu.memory_space<vmem>>, vector<256x256xbf16>
    %cst_14 = arith.constant dense<0.000000e+00> : vector<8x256xf32>
    %19 = tpu.matmul %17, %18, %cst_14 {dimension_numbers = #tpu.dot_dimension_numbers<[1], [0], [0], [1], [0, 0, 1, 1], [], []>} : vector<8x256xbf16>, vector<256x256xbf16>, vector<8x256xf32> -> vector<8x256xf32>
    %c0_15 = arith.constant 0 : index
    %c0_16 = arith.constant 0 : index
    %20 = vector.load %arg7[%c0_15, %c0_16] : memref<1x256xf32, #tpu.memory_space<vmem>>, vector<1x256xf32>
    %21 = vector.broadcast %20 : vector<1x256xf32> to vector<8x256xf32>
    %22 = arith.addf %19, %21 : vector<8x256xf32>
    %23 = math.tanh %22 : vector<8x256xf32>
    %24 = arith.truncf %23 : vector<8x256xf32> to vector<8x256xbf16>
    %c0_17 = arith.constant 0 : index
    %c0_18 = arith.constant 0 : index
    %25 = vector.load %arg8[%c0_17, %c0_18] : memref<512x7xbf16, #tpu.memory_space<vmem>>, vector<256x7xbf16>
    %cst_19 = arith.constant dense<0.000000e+00> : vector<8x7xf32>
    %26 = tpu.matmul %17, %25, %cst_19 {dimension_numbers = #tpu.dot_dimension_numbers<[1], [0], [0], [1], [0, 0, 1, 1], [], []>} : vector<8x256xbf16>, vector<256x7xbf16>, vector<8x7xf32> -> vector<8x7xf32>
    %c256 = arith.constant 256 : index
    %c0_20 = arith.constant 0 : index
    %27 = vector.load %arg8[%c256, %c0_20] : memref<512x7xbf16, #tpu.memory_space<vmem>>, vector<256x7xbf16>
    %cst_21 = arith.constant dense<0.000000e+00> : vector<8x7xf32>
    %28 = tpu.matmul %24, %27, %cst_21 {dimension_numbers = #tpu.dot_dimension_numbers<[1], [0], [0], [1], [0, 0, 1, 1], [], []>} : vector<8x256xbf16>, vector<256x7xbf16>, vector<8x7xf32> -> vector<8x7xf32>
    %29 = arith.addf %26, %28 : vector<8x7xf32>
    %c0_22 = arith.constant 0 : index
    %c0_23 = arith.constant 0 : index
    %30 = vector.load %arg9[%c0_22, %c0_23] : memref<1x7xf32, #tpu.memory_space<vmem>>, vector<1x7xf32>
    %31 = vector.broadcast %30 : vector<1x7xf32> to vector<8x7xf32>
    %32 = arith.addf %29, %31 : vector<8x7xf32>
    %c0_24 = arith.constant 0 : index
    %c0_25 = arith.constant 0 : index
    %33 = vector.load %arg10[%c0_24, %c0_25] : memref<8x7xf32, #tpu.memory_space<vmem>>, vector<8x7xf32>
    tpu.vector_store %arg10[%c0_24, %c0_25], %32 {strides = array<i32>} : memref<8x7xf32, #tpu.memory_space<vmem>>, vector<8x7xf32>,
    return
  }
  func.func @transform_0(%arg0: i32) -> (i32, i32) {
    %c0_i32 = arith.constant 0 : i32
    %c0_i32_0 = arith.constant 0 : i32
    return %arg0, %c0_i32 : i32, i32
  }
  func.func @transform_1(%arg0: i32) -> (i32, i32) {
    %c0_i32 = arith.constant 0 : i32
    %c0_i32_0 = arith.constant 0 : i32
    %c0_i32_1 = arith.constant 0 : i32
    return %c0_i32, %c0_i32_0 : i32, i32
  }
  func.func @transform_2(%arg0: i32) -> (i32, i32) {
    %c0_i32 = arith.constant 0 : i32
    %c0_i32_0 = arith.constant 0 : i32
    %c0_i32_1 = arith.constant 0 : i32
    return %c0_i32, %c0_i32_0 : i32, i32
  }
  func.func @transform_3(%arg0: i32) -> (i32, i32) {
    %c0_i32 = arith.constant 0 : i32
    %c0_i32_0 = arith.constant 0 : i32
    %c0_i32_1 = arith.constant 0 : i32
    return %c0_i32, %c0_i32_0 : i32, i32
  }
  func.func @transform_4(%arg0: i32) -> (i32, i32) {
    %c0_i32 = arith.constant 0 : i32
    %c0_i32_0 = arith.constant 0 : i32
    %c0_i32_1 = arith.constant 0 : i32
    return %c0_i32, %c0_i32_0 : i32, i32
  }
  func.func @transform_5(%arg0: i32) -> (i32, i32) {
    %c0_i32 = arith.constant 0 : i32
    %c0_i32_0 = arith.constant 0 : i32
    %c0_i32_1 = arith.constant 0 : i32
    return %c0_i32, %c0_i32_0 : i32, i32
  }
  func.func @transform_6(%arg0: i32) -> (i32, i32) {
    %c0_i32 = arith.constant 0 : i32
    %c0_i32_0 = arith.constant 0 : i32
    %c0_i32_1 = arith.constant 0 : i32
    return %c0_i32, %c0_i32_0 : i32, i32
  }
  func.func @transform_7(%arg0: i32) -> (i32, i32) {
    %c0_i32 = arith.constant 0 : i32
    %c0_i32_0 = arith.constant 0 : i32
    %c0_i32_1 = arith.constant 0 : i32
    return %c0_i32, %c0_i32_0 : i32, i32
  }
  func.func @transform_8(%arg0: i32) -> (i32, i32) {
    %c0_i32 = arith.constant 0 : i32
    %c0_i32_0 = arith.constant 0 : i32
    %c0_i32_1 = arith.constant 0 : i32
    return %c0_i32, %c0_i32_0 : i32, i32
  }
  func.func @transform_9(%arg0: i32) -> (i32, i32) {
    %c0_i32 = arith.constant 0 : i32
    %c0_i32_0 = arith.constant 0 : i32
    return %arg0, %c0_i32 : i32, i32
  }
}

</mosaic_0001>

<llo_original>
// kernel: tpu_custom_call.1
$region0: #{tpu_custom_call.1}
  #allocation0 [shape = 'u32[]', space=smem, size = 0x4, offset = 0x4, fixed_abs, tag = 'smem constant byte address 0x4 - core index']
  #allocation1 [shape = 'u32[144,128]{1,0:T(1,128)}', space=vmem, size = 0x12000, scoped, tag = 'internal scratch']
  %s0 = inlined_call_operand.hbm [shape: f32[8,1024], index: 0, kind: input, shape index: {}]
  %s1 = inlined_call_operand.hbm [shape: bf16[1024,256], index: 1, kind: input, shape index: {}]
  %s2 = inlined_call_operand.vmem [shape: f32[1,256], index: 2, kind: input, shape index: {}]
  %s3 = inlined_call_operand.vmem [shape: bf16[256,256], index: 3, kind: input, shape index: {}]
  %s4 = inlined_call_operand.vmem [shape: f32[1,256], index: 4, kind: input, shape index: {}]
  %s5 = inlined_call_operand.hbm [shape: bf16[256,256], index: 5, kind: input, shape index: {}]
  %s6 = inlined_call_operand.vmem [shape: f32[1,256], index: 6, kind: input, shape index: {}]
  %s7 = inlined_call_operand.vmem [shape: bf16[512,7], index: 7, kind: input, shape index: {}]
  %s8 = inlined_call_operand.vmem [shape: f32[1,7], index: 8, kind: input, shape index: {}]
  %s9 = inlined_call_operand.hbm [shape: f32[8,7], index: 9, kind: output, shape index: {}]
  %s10 = sld [smem:[#allocation0]]
  $region58: #{tpu_custom_call.1} parent=0
    _
  %s12 = ssub.s32 1, %s10
  %s13 = scalar_select 0, %s12, %s10
  $region1: #{tpu_custom_call.1} parent=0
    #allocation2 [shape = 'u8[32768]{0}', space=vmem, size = 0x8000, scoped, tag = 'input window, operand 0, single buffered']
    #allocation3 [shape = 's32[1]{0}', space=sflag, size = 0x4, scoped, tag = 'scoped memory for tpu_custom_call.1']
    #allocation4 [shape = 's32[1]{0}', space=sflag, size = 0x4, scoped, tag = 'scoped memory for tpu_custom_call.1']
    #allocation5 [shape = 'u8[524288]{0}', space=vmem, size = 0x80000, scoped, tag = 'input window, operand 1, single buffered']
    #allocation6 [shape = 's32[1]{0}', space=sflag, size = 0x4, scoped, tag = 'scoped memory for tpu_custom_call.1']
    #allocation7 [shape = 'u8[131072]{0}', space=vmem, size = 0x20000, scoped, tag = 'input window, operand 5, single buffered']
    #allocation8 [shape = 'u8[4096]{0}', space=vmem, size = 0x1000, scoped, tag = 'output window, operand 0, single buffered']
    %14 = vsyncpa [#allocation3], 0
    %15 = vsyncpa [#allocation6], 0
    %16 = vsyncpa [#allocation4], 0
    // Predicated region
    $region2: #{tpu_custom_call.1} parent=1 // pred_check
      _
    $region3: #{tpu_custom_call.1} parent=1 // pred_check_branch
      %18 = sbr.rel (0) target = $region5
    $region4: #{tpu_custom_call.1} parent=1 // pred_region
      %s20 = ssub.s32 1024, 1024
      %21 = vsyncadd [#allocation3], %s20
      %s23 = sshll.u32 [#allocation2], 4
      %s24 = int_to_ptr.vmem [resolvable:$true] %s23
      %26 = dma.hbm_to_vmem [thread:$0]  %s0, 1024, %s24, [#allocation3]
    $region5: #{tpu_custom_call.1} parent=1 // pred_fallthru
      _
    // Predicated region
    $region6: #{tpu_custom_call.1} parent=1 // pred_check
      _
    $region7: #{tpu_custom_call.1} parent=1 // pred_check_branch
      %28 = sbr.rel (0) target = $region9
    $region8: #{tpu_custom_call.1} parent=1 // pred_region
      %s30 = ssub.s32 16384, 16384
      %31 = vsyncadd [#allocation6], %s30
      %s32 = sshll.u32 [#allocation5], 4
      %s33 = int_to_ptr.vmem [resolvable:$true] %s32
      %38 = dma.hbm_to_vmem [thread:$0]  %s1, 16384, %s33, [#allocation6], 128, 128, 8
    $region9: #{tpu_custom_call.1} parent=1 // pred_fallthru
      _
    // Predicated region
    $region10: #{tpu_custom_call.1} parent=1 // pred_check
      _
    $region11: #{tpu_custom_call.1} parent=1 // pred_check_branch
      %40 = sbr.rel (0) target = $region13
    $region12: #{tpu_custom_call.1} parent=1 // pred_region
      _
    $region13: #{tpu_custom_call.1} parent=1 // pred_fallthru
      _
    // Predicated region
    $region14: #{tpu_custom_call.1} parent=1 // pred_check
      _
    $region15: #{tpu_custom_call.1} parent=1 // pred_check_branch
      %42 = sbr.rel (0) target = $region17
    $region16: #{tpu_custom_call.1} parent=1 // pred_region
      _
    $region17: #{tpu_custom_call.1} parent=1 // pred_fallthru
      _
    // Predicated region
    $region18: #{tpu_custom_call.1} parent=1 // pred_check
      _
    $region19: #{tpu_custom_call.1} parent=1 // pred_check_branch
      %44 = sbr.rel (0) target = $region21
    $region20: #{tpu_custom_call.1} parent=1 // pred_region
      _
    $region21: #{tpu_custom_call.1} parent=1 // pred_fallthru
      _
    // Predicated region
    $region22: #{tpu_custom_call.1} parent=1 // pred_check
      _
    $region23: #{tpu_custom_call.1} parent=1 // pred_check_branch
      %46 = sbr.rel (0) target = $region25
    $region24: #{tpu_custom_call.1} parent=1 // pred_region
      %s48 = ssub.s32 4096, 4096
      %49 = vsyncadd [#allocation6], %s48
      %s50 = sshll.u32 [#allocation7], 4
      %s51 = int_to_ptr.vmem [resolvable:$true] %s50
      %56 = dma.hbm_to_vmem [thread:$0]  %s5, 4096, %s51, [#allocation6], 128, 128, 8
    $region25: #{tpu_custom_call.1} parent=1 // pred_fallthru
      _
    // Predicated region
    $region26: #{tpu_custom_call.1} parent=1 // pred_check
      _
    $region27: #{tpu_custom_call.1} parent=1 // pred_check_branch
      %58 = sbr.rel (0) target = $region29
    $region28: #{tpu_custom_call.1} parent=1 // pred_region
      _
    $region29: #{tpu_custom_call.1} parent=1 // pred_fallthru
      _
    // Predicated region
    $region30: #{tpu_custom_call.1} parent=1 // pred_check
      _
    $region31: #{tpu_custom_call.1} parent=1 // pred_check_branch
      %60 = sbr.rel (0) target = $region33
    $region32: #{tpu_custom_call.1} parent=1 // pred_region
      _
    $region33: #{tpu_custom_call.1} parent=1 // pred_fallthru
      _
    // Predicated region
    $region34: #{tpu_custom_call.1} parent=1 // pred_check
      _
    $region35: #{tpu_custom_call.1} parent=1 // pred_check_branch
      %62 = sbr.rel (0) target = $region37
    $region36: #{tpu_custom_call.1} parent=1 // pred_region
      _
    $region37: #{tpu_custom_call.1} parent=1 // pred_fallthru
      _
    // Predicated region
    $region38: #{tpu_custom_call.1} parent=1 // pred_check
      _
    $region39: #{tpu_custom_call.1} parent=1 // pred_check_branch
      %64 = sbr.rel (0) target = $region41
    $region40: #{tpu_custom_call.1} parent=1 // pred_region
      %65 = dma.done [#allocation3], 1024
    $region41: #{tpu_custom_call.1} parent=1 // pred_fallthru
      _
    // Predicated region
    $region42: #{tpu_custom_call.1} parent=1 // pred_check
      _
    $region43: #{tpu_custom_call.1} parent=1 // pred_check_branch
      %67 = sbr.rel (0) target = $region45
    $region44: #{tpu_custom_call.1} parent=1 // pred_region
      %68 = dma.done [#allocation6], 16384
    $region45: #{tpu_custom_call.1} parent=1 // pred_fallthru
      _
    // Predicated region
    $region46: #{tpu_custom_call.1} parent=1 // pred_check
      _
    $region47: #{tpu_custom_call.1} parent=1 // pred_check_branch
      %70 = sbr.rel (0) target = $region49
    $region48: #{tpu_custom_call.1} parent=1 // pred_region
      %71 = dma.done [#allocation6], 4096
    $region49: #{tpu_custom_call.1} parent=1 // pred_fallthru
      _
    %v73 = vld [vmem:[#allocation2] sm:$0xff]
    %v74 = vld [vmem:[#allocation2 + $0x8] sm:$0xff]
    %v75 = vld [vmem:[#allocation2 + $0x10] sm:$0xff]
    %v76 = vld [vmem:[#allocation2 + $0x18] sm:$0xff]
    %v77 = vld [vmem:[#allocation2 + $0x20] sm:$0xff]
    %v78 = vld [vmem:[#allocation2 + $0x28] sm:$0xff]
    %v79 = vld [vmem:[#allocation2 + $0x30] sm:$0xff]
    %v80 = vld [vmem:[#allocation2 + $0x38] sm:$0xff]
    %v81 = vpack.c.bf16 %v73, %v73
    %v82 = vpack.c.bf16 %v74, %v74
    %v83 = vpack.c.bf16 %v75, %v75
    %v84 = vpack.c.bf16 %v76, %v76
    %v85 = vpack.c.bf16 %v77, %v77
    %v86 = vpack.c.bf16 %v78, %v78
    %v87 = vpack.c.bf16 %v79, %v79
    %v88 = vpack.c.bf16 %v80, %v80
    %v89 = vld [vmem:[#allocation5] sm:$0xff]
    %v90 = vld [vmem:[#allocation5 + $0x8] sm:$0xff]
    %v91 = vld [vmem:[#allocation5 + $0x10] sm:$0xff]
    %v92 = vld [vmem:[#allocation5 + $0x18] sm:$0xff]
    %v93 = vld [vmem:[#allocation5 + $0x20] sm:$0xff]
    %v94 = vld [vmem:[#allocation5 + $0x28] sm:$0xff]
    %v95 = vld [vmem:[#allocation5 + $0x30] sm:$0xff]
    %v96 = vld [vmem:[#allocation5 + $0x38] sm:$0xff]
    %v97 = vld [vmem:[#allocation5 + $0x40] sm:$0xff]
    %v98 = vld [vmem:[#allocation5 + $0x48] sm:$0xff]
    %v99 = vld [vmem:[#allocation5 + $0x50] sm:$0xff]
    %v100 = vld [vmem:[#allocation5 + $0x58] sm:$0xff]
    %v101 = vld [vmem:[#allocation5 + $0x60] sm:$0xff]
    %v102 = vld [vmem:[#allocation5 + $0x68] sm:$0xff]
    %v103 = vld [vmem:[#allocation5 + $0x70] sm:$0xff]
    %v104 = vld [vmem:[#allocation5 + $0x78] sm:$0xff]
    %v105 = vld [vmem:[#allocation5 + $0x80] sm:$0xff]
    %v106 = vld [vmem:[#allocation5 + $0x88] sm:$0xff]
    %v107 = vld [vmem:[#allocation5 + $0x90] sm:$0xff]
    %v108 = vld [vmem:[#allocation5 + $0x98] sm:$0xff]
    %v109 = vld [vmem:[#allocation5 + $0xa0] sm:$0xff]
    %v110 = vld [vmem:[#allocation5 + $0xa8] sm:$0xff]
    %v111 = vld [vmem:[#allocation5 + $0xb0] sm:$0xff]
    %v112 = vld [vmem:[#allocation5 + $0xb8] sm:$0xff]
    %v113 = vld [vmem:[#allocation5 + $0xc0] sm:$0xff]
    %v114 = vld [vmem:[#allocation5 + $0xc8] sm:$0xff]
    %v115 = vld [vmem:[#allocation5 + $0xd0] sm:$0xff]
    %v116 = vld [vmem:[#allocation5 + $0xd8] sm:$0xff]
    %v117 = vld [vmem:[#allocation5 + $0xe0] sm:$0xff]
    %v118 = vld [vmem:[#allocation5 + $0xe8] sm:$0xff]
    %v119 = vld [vmem:[#allocation5 + $0xf0] sm:$0xff]
    %v120 = vld [vmem:[#allocation5 + $0xf8] sm:$0xff]
    %v121 = vld [vmem:[#allocation5 + $0x100] sm:$0xff]
    %v122 = vld [vmem:[#allocation5 + $0x108] sm:$0xff]
    %v123 = vld [vmem:[#allocation5 + $0x110] sm:$0xff]
    %v124 = vld [vmem:[#allocation5 + $0x118] sm:$0xff]
    %v125 = vld [vmem:[#allocation5 + $0x120] sm:$0xff]
    %v126 = vld [vmem:[#allocation5 + $0x128] sm:$0xff]
    %v127 = vld [vmem:[#allocation5 + $0x130] sm:$0xff]
    %v128 = vld [vmem:[#allocation5 + $0x138] sm:$0xff]
    %v129 = vld [vmem:[#allocation5 + $0x140] sm:$0xff]
    %v130 = vld [vmem:[#allocation5 + $0x148] sm:$0xff]
    %v131 = vld [vmem:[#allocation5 + $0x150] sm:$0xff]
    %v132 = vld [vmem:[#allocation5 + $0x158] sm:$0xff]
    %v133 = vld [vmem:[#allocation5 + $0x160] sm:$0xff]
    %v134 = vld [vmem:[#allocation5 + $0x168] sm:$0xff]
    %v135 = vld [vmem:[#allocation5 + $0x170] sm:$0xff]
    %v136 = vld [vmem:[#allocation5 + $0x178] sm:$0xff]
    %v137 = vld [vmem:[#allocation5 + $0x180] sm:$0xff]
    %v138 = vld [vmem:[#allocation5 + $0x188] sm:$0xff]
    %v139 = vld [vmem:[#allocation5 + $0x190] sm:$0xff]
    %v140 = vld [vmem:[#allocation5 + $0x198] sm:$0xff]
    %v141 = vld [vmem:[#allocation5 + $0x1a0] sm:$0xff]
    %v142 = vld [vmem:[#allocation5 + $0x1a8] sm:$0xff]
    %v143 = vld [vmem:[#allocation5 + $0x1b0] sm:$0xff]
    %v144 = vld [vmem:[#allocation5 + $0x1b8] sm:$0xff]
    %v145 = vld [vmem:[#allocation5 + $0x1c0] sm:$0xff]
    %v146 = vld [vmem:[#allocation5 + $0x1c8] sm:$0xff]
    %v147 = vld [vmem:[#allocation5 + $0x1d0] sm:$0xff]
    %v148 = vld [vmem:[#allocation5 + $0x1d8] sm:$0xff]
    %v149 = vld [vmem:[#allocation5 + $0x1e0] sm:$0xff]
    %v150 = vld [vmem:[#allocation5 + $0x1e8] sm:$0xff]
    %v151 = vld [vmem:[#allocation5 + $0x1f0] sm:$0xff]
    %v152 = vld [vmem:[#allocation5 + $0x1f8] sm:$0xff]
    %v153 = vld [vmem:[#allocation5 + $0x200] sm:$0xff]
    %v154 = vld [vmem:[#allocation5 + $0x208] sm:$0xff]
    %v155 = vld [vmem:[#allocation5 + $0x210] sm:$0xff]
    %v156 = vld [vmem:[#allocation5 + $0x218] sm:$0xff]
    %v157 = vld [vmem:[#allocation5 + $0x220] sm:$0xff]
    %v158 = vld [vmem:[#allocation5 + $0x228] sm:$0xff]
    %v159 = vld [vmem:[#allocation5 + $0x230] sm:$0xff]
    %v160 = vld [vmem:[#allocation5 + $0x238] sm:$0xff]
    %v161 = vld [vmem:[#allocation5 + $0x240] sm:$0xff]
    %v162 = vld [vmem:[#allocation5 + $0x248] sm:$0xff]
    %v163 = vld [vmem:[#allocation5 + $0x250] sm:$0xff]
    %v164 = vld [vmem:[#allocation5 + $0x258] sm:$0xff]
    %v165 = vld [vmem:[#allocation5 + $0x260] sm:$0xff]
    %v166 = vld [vmem:[#allocation5 + $0x268] sm:$0xff]
    %v167 = vld [vmem:[#allocation5 + $0x270] sm:$0xff]
    %v168 = vld [vmem:[#allocation5 + $0x278] sm:$0xff]
    %v169 = vld [vmem:[#allocation5 + $0x280] sm:$0xff]
    %v170 = vld [vmem:[#allocation5 + $0x288] sm:$0xff]
    %v171 = vld [vmem:[#allocation5 + $0x290] sm:$0xff]
    %v172 = vld [vmem:[#allocation5 + $0x298] sm:$0xff]
    %v173 = vld [vmem:[#allocation5 + $0x2a0] sm:$0xff]
    %v174 = vld [vmem:[#allocation5 + $0x2a8] sm:$0xff]
    %v175 = vld [vmem:[#allocation5 + $0x2b0] sm:$0xff]
    %v176 = vld [vmem:[#allocation5 + $0x2b8] sm:$0xff]
    %v177 = vld [vmem:[#allocation5 + $0x2c0] sm:$0xff]
    %v178 = vld [vmem:[#allocation5 + $0x2c8] sm:$0xff]
    %v179 = vld [vmem:[#allocation5 + $0x2d0] sm:$0xff]
    %v180 = vld [vmem:[#allocation5 + $0x2d8] sm:$0xff]
    %v181 = vld [vmem:[#allocation5 + $0x2e0] sm:$0xff]
    %v182 = vld [vmem:[#allocation5 + $0x2e8] sm:$0xff]
    %v183 = vld [vmem:[#allocation5 + $0x2f0] sm:$0xff]
    %v184 = vld [vmem:[#allocation5 + $0x2f8] sm:$0xff]
    %v185 = vld [vmem:[#allocation5 + $0x300] sm:$0xff]
    %v186 = vld [vmem:[#allocation5 + $0x308] sm:$0xff]
    %v187 = vld [vmem:[#allocation5 + $0x310] sm:$0xff]
    %v188 = vld [vmem:[#allocation5 + $0x318] sm:$0xff]
    %v189 = vld [vmem:[#allocation5 + $0x320] sm:$0xff]
    %v190 = vld [vmem:[#allocation5 + $0x328] sm:$0xff]
    %v191 = vld [vmem:[#allocation5 + $0x330] sm:$0xff]
    %v192 = vld [vmem:[#allocation5 + $0x338] sm:$0xff]
    %v193 = vld [vmem:[#allocation5 + $0x340] sm:$0xff]
    %v194 = vld [vmem:[#allocation5 + $0x348] sm:$0xff]
    %v195 = vld [vmem:[#allocation5 + $0x350] sm:$0xff]
    %v196 = vld [vmem:[#allocation5 + $0x358] sm:$0xff]
    %v197 = vld [vmem:[#allocation5 + $0x360] sm:$0xff]
    %v198 = vld [vmem:[#allocation5 + $0x368] sm:$0xff]
    %v199 = vld [vmem:[#allocation5 + $0x370] sm:$0xff]
    %v200 = vld [vmem:[#allocation5 + $0x378] sm:$0xff]
    %v201 = vld [vmem:[#allocation5 + $0x380] sm:$0xff]
    %v202 = vld [vmem:[#allocation5 + $0x388] sm:$0xff]
    %v203 = vld [vmem:[#allocation5 + $0x390] sm:$0xff]
    %v204 = vld [vmem:[#allocation5 + $0x398] sm:$0xff]
    %v205 = vld [vmem:[#allocation5 + $0x3a0] sm:$0xff]
    %v206 = vld [vmem:[#allocation5 + $0x3a8] sm:$0xff]
    %v207 = vld [vmem:[#allocation5 + $0x3b0] sm:$0xff]
    %v208 = vld [vmem:[#allocation5 + $0x3b8] sm:$0xff]
    %v209 = vld [vmem:[#allocation5 + $0x3c0] sm:$0xff]
    %v210 = vld [vmem:[#allocation5 + $0x3c8] sm:$0xff]
    %v211 = vld [vmem:[#allocation5 + $0x3d0] sm:$0xff]
    %v212 = vld [vmem:[#allocation5 + $0x3d8] sm:$0xff]
    %v213 = vld [vmem:[#allocation5 + $0x3e0] sm:$0xff]
    %v214 = vld [vmem:[#allocation5 + $0x3e8] sm:$0xff]
    %v215 = vld [vmem:[#allocation5 + $0x3f0] sm:$0xff]
    %v216 = vld [vmem:[#allocation5 + $0x3f8] sm:$0xff]
    %v217 = vld [vmem:[%s2] sm:$0x3]
    %v219 = vlaneseq
    %v220 = vshrl.u32 %v219, 7
    %v221 = vsub.s32 0, %v220
    %v222 = vrot.slane %v217, %v221
    %v223 = vlaneseq
    %v224 = vshrl.u32 %v223, 7
    %v225 = vsub.s32 1, %v224
    %v226 = vrot.slane %v217, %v225
    %v357 = vunpack.c.l.b16 %v89
    %v358 = vunpack.c.h.b16 %v89
    %v359 = vunpack.c.l.b16 %v90
    %v360 = vunpack.c.h.b16 %v90
    %v361 = vunpack.c.l.b16 %v91
    %v362 = vunpack.c.h.b16 %v91
    %v363 = vunpack.c.l.b16 %v92
    %v364 = vunpack.c.h.b16 %v92
    %v365 = vunpack.c.l.b16 %v93
    %v366 = vunpack.c.h.b16 %v93
    %v367 = vunpack.c.l.b16 %v94
    %v368 = vunpack.c.h.b16 %v94
    %v369 = vunpack.c.l.b16 %v95
    %v370 = vunpack.c.h.b16 %v95
    %v371 = vunpack.c.l.b16 %v96
    %v372 = vunpack.c.h.b16 %v96
    %v373 = vunpack.c.l.b16 %v97
    %v374 = vunpack.c.h.b16 %v97
    %v375 = vunpack.c.l.b16 %v98
    %v376 = vunpack.c.h.b16 %v98
    %v377 = vunpack.c.l.b16 %v99
    %v378 = vunpack.c.h.b16 %v99
    %v379 = vunpack.c.l.b16 %v100
    %v380 = vunpack.c.h.b16 %v100
    %v381 = vunpack.c.l.b16 %v101
    %v382 = vunpack.c.h.b16 %v101
    %v383 = vunpack.c.l.b16 %v102
    %v384 = vunpack.c.h.b16 %v102
    %v385 = vunpack.c.l.b16 %v103
    %v386 = vunpack.c.h.b16 %v103
    %v387 = vunpack.c.l.b16 %v104
    %v388 = vunpack.c.h.b16 %v104
    %v389 = vunpack.c.l.b16 %v105
    %v390 = vunpack.c.h.b16 %v105
    %v391 = vunpack.c.l.b16 %v106
    %v392 = vunpack.c.h.b16 %v106
    %v393 = vunpack.c.l.b16 %v107
    %v394 = vunpack.c.h.b16 %v107
    %v395 = vunpack.c.l.b16 %v108
    %v396 = vunpack.c.h.b16 %v108
    %v397 = vunpack.c.l.b16 %v109
    %v398 = vunpack.c.h.b16 %v109
    %v399 = vunpack.c.l.b16 %v110
    %v400 = vunpack.c.h.b16 %v110
    %v401 = vunpack.c.l.b16 %v111
    %v402 = vunpack.c.h.b16 %v111
    %v403 = vunpack.c.l.b16 %v112
    %v404 = vunpack.c.h.b16 %v112
    %v405 = vunpack.c.l.b16 %v113
    %v406 = vunpack.c.h.b16 %v113
    %v407 = vunpack.c.l.b16 %v114
    %v408 = vunpack.c.h.b16 %v114
    %v409 = vunpack.c.l.b16 %v115
    %v410 = vunpack.c.h.b16 %v115
    %v411 = vunpack.c.l.b16 %v116
    %v412 = vunpack.c.h.b16 %v116
    %v413 = vunpack.c.l.b16 %v117
    %v414 = vunpack.c.h.b16 %v117
    %v415 = vunpack.c.l.b16 %v118
    %v416 = vunpack.c.h.b16 %v118
    %v417 = vunpack.c.l.b16 %v119
    %v418 = vunpack.c.h.b16 %v119
    %v419 = vunpack.c.l.b16 %v120
    %v420 = vunpack.c.h.b16 %v120
    %v421 = vunpack.c.l.b16 %v121
    %v422 = vunpack.c.h.b16 %v121
    %v423 = vunpack.c.l.b16 %v122
    %v424 = vunpack.c.h.b16 %v122
    %v425 = vunpack.c.l.b16 %v123
    %v426 = vunpack.c.h.b16 %v123
    %v427 = vunpack.c.l.b16 %v124
    %v428 = vunpack.c.h.b16 %v124
    %v429 = vunpack.c.l.b16 %v125
    %v430 = vunpack.c.h.b16 %v125
    %v431 = vunpack.c.l.b16 %v126
    %v432 = vunpack.c.h.b16 %v126
    %v433 = vunpack.c.l.b16 %v127
    %v434 = vunpack.c.h.b16 %v127
    %v435 = vunpack.c.l.b16 %v128
    %v436 = vunpack.c.h.b16 %v128
    %v437 = vunpack.c.l.b16 %v129
    %v438 = vunpack.c.h.b16 %v129
    %v439 = vunpack.c.l.b16 %v130
    %v440 = vunpack.c.h.b16 %v130
    %v441 = vunpack.c.l.b16 %v131
    %v442 = vunpack.c.h.b16 %v131
    %v443 = vunpack.c.l.b16 %v132
    %v444 = vunpack.c.h.b16 %v132
    %v445 = vunpack.c.l.b16 %v133
    %v446 = vunpack.c.h.b16 %v133
    %v447 = vunpack.c.l.b16 %v134
    %v448 = vunpack.c.h.b16 %v134
    %v449 = vunpack.c.l.b16 %v135
    %v450 = vunpack.c.h.b16 %v135
    %v451 = vunpack.c.l.b16 %v136
    %v452 = vunpack.c.h.b16 %v136
    %v453 = vunpack.c.l.b16 %v137
    %v454 = vunpack.c.h.b16 %v137
    %v455 = vunpack.c.l.b16 %v138
    %v456 = vunpack.c.h.b16 %v138
    %v457 = vunpack.c.l.b16 %v139
    %v458 = vunpack.c.h.b16 %v139
    %v459 = vunpack.c.l.b16 %v140
    %v460 = vunpack.c.h.b16 %v140
    %v461 = vunpack.c.l.b16 %v141
    %v462 = vunpack.c.h.b16 %v141
    %v463 = vunpack.c.l.b16 %v142
    %v464 = vunpack.c.h.b16 %v142
    %v465 = vunpack.c.l.b16 %v143
    %v466 = vunpack.c.h.b16 %v143
    %v467 = vunpack.c.l.b16 %v144
    %v468 = vunpack.c.h.b16 %v144
    %v469 = vunpack.c.l.b16 %v145
    %v470 = vunpack.c.h.b16 %v145
    %v471 = vunpack.c.l.b16 %v146
    %v472 = vunpack.c.h.b16 %v146
    %v473 = vunpack.c.l.b16 %v147
    %v474 = vunpack.c.h.b16 %v147
    %v475 = vunpack.c.l.b16 %v148
    %v476 = vunpack.c.h.b16 %v148
    %v477 = vunpack.c.l.b16 %v149
    %v478 = vunpack.c.h.b16 %v149
    %v479 = vunpack.c.l.b16 %v150
    %v480 = vunpack.c.h.b16 %v150
    %v481 = vunpack.c.l.b16 %v151
    %v482 = vunpack.c.h.b16 %v151
    %v483 = vunpack.c.l.b16 %v152
    %v484 = vunpack.c.h.b16 %v152
    %v485 = vunpack.c.l.b16 %v153
    %v486 = vunpack.c.h.b16 %v153
    %v487 = vunpack.c.l.b16 %v154
    %v488 = vunpack.c.h.b16 %v154
    %v489 = vunpack.c.l.b16 %v155
    %v490 = vunpack.c.h.b16 %v155
    %v491 = vunpack.c.l.b16 %v156
    %v492 = vunpack.c.h.b16 %v156
    %v493 = vunpack.c.l.b16 %v157
    %v494 = vunpack.c.h.b16 %v157
    %v495 = vunpack.c.l.b16 %v158
    %v496 = vunpack.c.h.b16 %v158
    %v497 = vunpack.c.l.b16 %v159
    %v498 = vunpack.c.h.b16 %v159
    %v499 = vunpack.c.l.b16 %v160
    %v500 = vunpack.c.h.b16 %v160
    %v501 = vunpack.c.l.b16 %v161
    %v502 = vunpack.c.h.b16 %v161
    %v503 = vunpack.c.l.b16 %v162
    %v504 = vunpack.c.h.b16 %v162
    %v505 = vunpack.c.l.b16 %v163
    %v506 = vunpack.c.h.b16 %v163
    %v507 = vunpack.c.l.b16 %v164
    %v508 = vunpack.c.h.b16 %v164
    %v509 = vunpack.c.l.b16 %v165
    %v510 = vunpack.c.h.b16 %v165
    %v511 = vunpack.c.l.b16 %v166
    %v512 = vunpack.c.h.b16 %v166
    %v513 = vunpack.c.l.b16 %v167
    %v514 = vunpack.c.h.b16 %v167
    %v515 = vunpack.c.l.b16 %v168
    %v516 = vunpack.c.h.b16 %v168
    %v517 = vunpack.c.l.b16 %v169
    %v518 = vunpack.c.h.b16 %v169
    %v519 = vunpack.c.l.b16 %v170
    %v520 = vunpack.c.h.b16 %v170
    %v521 = vunpack.c.l.b16 %v171
    %v522 = vunpack.c.h.b16 %v171
    %v523 = vunpack.c.l.b16 %v172
    %v524 = vunpack.c.h.b16 %v172
    %v525 = vunpack.c.l.b16 %v173
    %v526 = vunpack.c.h.b16 %v173
    %v527 = vunpack.c.l.b16 %v174
    %v528 = vunpack.c.h.b16 %v174
    %v529 = vunpack.c.l.b16 %v175
    %v530 = vunpack.c.h.b16 %v175
    %v531 = vunpack.c.l.b16 %v176
    %v532 = vunpack.c.h.b16 %v176
    %v533 = vunpack.c.l.b16 %v177
    %v534 = vunpack.c.h.b16 %v177
    %v535 = vunpack.c.l.b16 %v178
    %v536 = vunpack.c.h.b16 %v178
    %v537 = vunpack.c.l.b16 %v179
    %v538 = vunpack.c.h.b16 %v179
    %v539 = vunpack.c.l.b16 %v180
    %v540 = vunpack.c.h.b16 %v180
    %v541 = vunpack.c.l.b16 %v181
    %v542 = vunpack.c.h.b16 %v181
    %v543 = vunpack.c.l.b16 %v182
    %v544 = vunpack.c.h.b16 %v182
    %v545 = vunpack.c.l.b16 %v183
    %v546 = vunpack.c.h.b16 %v183
    %v547 = vunpack.c.l.b16 %v184
    %v548 = vunpack.c.h.b16 %v184
    %v549 = vunpack.c.l.b16 %v185
    %v550 = vunpack.c.h.b16 %v185
    %v551 = vunpack.c.l.b16 %v186
    %v552 = vunpack.c.h.b16 %v186
    %v553 = vunpack.c.l.b16 %v187
    %v554 = vunpack.c.h.b16 %v187
    %v555 = vunpack.c.l.b16 %v188
    %v556 = vunpack.c.h.b16 %v188
    %v557 = vunpack.c.l.b16 %v189
    %v558 = vunpack.c.h.b16 %v189
    %v559 = vunpack.c.l.b16 %v190
    %v560 = vunpack.c.h.b16 %v190
    %v561 = vunpack.c.l.b16 %v191
    %v562 = vunpack.c.h.b16 %v191
    %v563 = vunpack.c.l.b16 %v192
    %v564 = vunpack.c.h.b16 %v192
    %v565 = vunpack.c.l.b16 %v193
    %v566 = vunpack.c.h.b16 %v193
    %v567 = vunpack.c.l.b16 %v194
    %v568 = vunpack.c.h.b16 %v194
    %v569 = vunpack.c.l.b16 %v195
    %v570 = vunpack.c.h.b16 %v195
    %v571 = vunpack.c.l.b16 %v196
    %v572 = vunpack.c.h.b16 %v196
    %v573 = vunpack.c.l.b16 %v197
    %v574 = vunpack.c.h.b16 %v197
    %v575 = vunpack.c.l.b16 %v198
    %v576 = vunpack.c.h.b16 %v198
    %v577 = vunpack.c.l.b16 %v199
    %v578 = vunpack.c.h.b16 %v199
    %v579 = vunpack.c.l.b16 %v200
    %v580 = vunpack.c.h.b16 %v200
    %v581 = vunpack.c.l.b16 %v201
    %v582 = vunpack.c.h.b16 %v201
    %v583 = vunpack.c.l.b16 %v202
    %v584 = vunpack.c.h.b16 %v202
    %v585 = vunpack.c.l.b16 %v203
    %v586 = vunpack.c.h.b16 %v203
    %v587 = vunpack.c.l.b16 %v204
    %v588 = vunpack.c.h.b16 %v204
    %v589 = vunpack.c.l.b16 %v205
    %v590 = vunpack.c.h.b16 %v205
    %v591 = vunpack.c.l.b16 %v206
    %v592 = vunpack.c.h.b16 %v206
    %v593 = vunpack.c.l.b16 %v207
    %v594 = vunpack.c.h.b16 %v207
    %v595 = vunpack.c.l.b16 %v208
    %v596 = vunpack.c.h.b16 %v208
    %v597 = vunpack.c.l.b16 %v209
    %v598 = vunpack.c.h.b16 %v209
    %v599 = vunpack.c.l.b16 %v210
    %v600 = vunpack.c.h.b16 %v210
    %v601 = vunpack.c.l.b16 %v211
    %v602 = vunpack.c.h.b16 %v211
    %v603 = vunpack.c.l.b16 %v212
    %v604 = vunpack.c.h.b16 %v212
    %v605 = vunpack.c.l.b16 %v213
    %v606 = vunpack.c.h.b16 %v213
    %v607 = vunpack.c.l.b16 %v214
    %v608 = vunpack.c.h.b16 %v214
    %v609 = vunpack.c.l.b16 %v215
    %v610 = vunpack.c.h.b16 %v215
    %v611 = vunpack.c.l.b16 %v216
    %v612 = vunpack.c.h.b16 %v216
    %v613 = vpack.c.b16 %v359, %v357
    %v614 = vpack.c.b16 %v360, %v358
    %v615 = vpack.c.b16 %v363, %v361
    %v616 = vpack.c.b16 %v364, %v362
    %v617 = vpack.c.b16 %v367, %v365
    %v618 = vpack.c.b16 %v368, %v366
    %v619 = vpack.c.b16 %v371, %v369
    %v620 = vpack.c.b16 %v372, %v370
    %v621 = vpack.c.b16 %v375, %v373
    %v622 = vpack.c.b16 %v376, %v374
    %v623 = vpack.c.b16 %v379, %v377
    %v624 = vpack.c.b16 %v380, %v378
    %v625 = vpack.c.b16 %v383, %v381
    %v626 = vpack.c.b16 %v384, %v382
    %v627 = vpack.c.b16 %v387, %v385
    %v628 = vpack.c.b16 %v388, %v386
    %v629 = vpack.c.b16 %v391, %v389
    %v630 = vpack.c.b16 %v392, %v390
    %v631 = vpack.c.b16 %v395, %v393
    %v632 = vpack.c.b16 %v396, %v394
    %v633 = vpack.c.b16 %v399, %v397
    %v634 = vpack.c.b16 %v400, %v398
    %v635 = vpack.c.b16 %v403, %v401
    %v636 = vpack.c.b16 %v404, %v402
    %v637 = vpack.c.b16 %v407, %v405
    %v638 = vpack.c.b16 %v408, %v406
    %v639 = vpack.c.b16 %v411, %v409
    %v640 = vpack.c.b16 %v412, %v410
    %v641 = vpack.c.b16 %v415, %v413
    %v642 = vpack.c.b16 %v416, %v414
    %v643 = vpack.c.b16 %v419, %v417
    %v644 = vpack.c.b16 %v420, %v418
    %v645 = vpack.c.b16 %v423, %v421
    %v646 = vpack.c.b16 %v424, %v422
    %v647 = vpack.c.b16 %v427, %v425
    %v648 = vpack.c.b16 %v428, %v426
    %v649 = vpack.c.b16 %v431, %v429
    %v650 = vpack.c.b16 %v432, %v430
    %v651 = vpack.c.b16 %v435, %v433
    %v652 = vpack.c.b16 %v436, %v434
    %v653 = vpack.c.b16 %v439, %v437
    %v654 = vpack.c.b16 %v440, %v438
    %v655 = vpack.c.b16 %v443, %v441
    %v656 = vpack.c.b16 %v444, %v442
    %v657 = vpack.c.b16 %v447, %v445
    %v658 = vpack.c.b16 %v448, %v446
    %v659 = vpack.c.b16 %v451, %v449
    %v660 = vpack.c.b16 %v452, %v450
    %v661 = vpack.c.b16 %v455, %v453
    %v662 = vpack.c.b16 %v456, %v454
    %v663 = vpack.c.b16 %v459, %v457
    %v664 = vpack.c.b16 %v460, %v458
    %v665 = vpack.c.b16 %v463, %v461
    %v666 = vpack.c.b16 %v464, %v462
    %v667 = vpack.c.b16 %v467, %v465
    %v668 = vpack.c.b16 %v468, %v466
    %v669 = vpack.c.b16 %v471, %v469
    %v670 = vpack.c.b16 %v472, %v470
    %v671 = vpack.c.b16 %v475, %v473
    %v672 = vpack.c.b16 %v476, %v474
    %v673 = vpack.c.b16 %v479, %v477
    %v674 = vpack.c.b16 %v480, %v478
    %v675 = vpack.c.b16 %v483, %v481
    %v676 = vpack.c.b16 %v484, %v482
    %v677 = vpack.c.b16 %v487, %v485
    %v678 = vpack.c.b16 %v488, %v486
    %v679 = vpack.c.b16 %v491, %v489
    %v680 = vpack.c.b16 %v492, %v490
    %v681 = vpack.c.b16 %v495, %v493
    %v682 = vpack.c.b16 %v496, %v494
    %v683 = vpack.c.b16 %v499, %v497
    %v684 = vpack.c.b16 %v500, %v498
    %v685 = vpack.c.b16 %v503, %v501
    %v686 = vpack.c.b16 %v504, %v502
    %v687 = vpack.c.b16 %v507, %v505
    %v688 = vpack.c.b16 %v508, %v506
    %v689 = vpack.c.b16 %v511, %v509
    %v690 = vpack.c.b16 %v512, %v510
    %v691 = vpack.c.b16 %v515, %v513
    %v692 = vpack.c.b16 %v516, %v514
    %v693 = vpack.c.b16 %v519, %v517
    %v694 = vpack.c.b16 %v520, %v518
    %v695 = vpack.c.b16 %v523, %v521
    %v696 = vpack.c.b16 %v524, %v522
    %v697 = vpack.c.b16 %v527, %v525
    %v698 = vpack.c.b16 %v528, %v526
    %v699 = vpack.c.b16 %v531, %v529
    %v700 = vpack.c.b16 %v532, %v530
    %v701 = vpack.c.b16 %v535, %v533
    %v702 = vpack.c.b16 %v536, %v534
    %v703 = vpack.c.b16 %v539, %v537
    %v704 = vpack.c.b16 %v540, %v538
    %v705 = vpack.c.b16 %v543, %v541
    %v706 = vpack.c.b16 %v544, %v542
    %v707 = vpack.c.b16 %v547, %v545
    %v708 = vpack.c.b16 %v548, %v546
    %v709 = vpack.c.b16 %v551, %v549
    %v710 = vpack.c.b16 %v552, %v550
    %v711 = vpack.c.b16 %v555, %v553
    %v712 = vpack.c.b16 %v556, %v554
    %v713 = vpack.c.b16 %v559, %v557
    %v714 = vpack.c.b16 %v560, %v558
    %v715 = vpack.c.b16 %v563, %v561
    %v716 = vpack.c.b16 %v564, %v562
    %v717 = vpack.c.b16 %v567, %v565
    %v718 = vpack.c.b16 %v568, %v566
    %v719 = vpack.c.b16 %v571, %v569
    %v720 = vpack.c.b16 %v572, %v570
    %v721 = vpack.c.b16 %v575, %v573
    %v722 = vpack.c.b16 %v576, %v574
    %v723 = vpack.c.b16 %v579, %v577
    %v724 = vpack.c.b16 %v580, %v578
    %v725 = vpack.c.b16 %v583, %v581
    %v726 = vpack.c.b16 %v584, %v582
    %v727 = vpack.c.b16 %v587, %v585
    %v728 = vpack.c.b16 %v588, %v586
    %v729 = vpack.c.b16 %v591, %v589
    %v730 = vpack.c.b16 %v592, %v590
    %v731 = vpack.c.b16 %v595, %v593
    %v732 = vpack.c.b16 %v596, %v594
    %v733 = vpack.c.b16 %v599, %v597
    %v734 = vpack.c.b16 %v600, %v598
    %v735 = vpack.c.b16 %v603, %v601
    %v736 = vpack.c.b16 %v604, %v602
    %v737 = vpack.c.b16 %v607, %v605
    %v738 = vpack.c.b16 %v608, %v606
    %v739 = vpack.c.b16 %v611, %v609
    %v740 = vpack.c.b16 %v612, %v610
    %869 = vmatprep.subr.bf16.mxu0 %v628
    %870 = vmatpush1.bf16.msra.mxu0 %v627
    %871 = vmatprep.subr.bf16.mxu0 %v626
    %872 = vmatpush1.bf16.msra.mxu0 %v625
    %873 = vmatprep.subr.bf16.mxu0 %v624
    %874 = vmatpush1.bf16.msra.mxu0 %v623
    %875 = vmatprep.subr.bf16.mxu0 %v622
    %876 = vmatpush1.bf16.msra.mxu0 %v621
    %877 = vmatprep.subr.bf16.mxu0 %v620
    %878 = vmatpush1.bf16.msra.mxu0 %v619
    %879 = vmatprep.subr.bf16.mxu0 %v618
    %880 = vmatpush1.bf16.msra.mxu0 %v617
    %881 = vmatprep.subr.bf16.mxu0 %v616
    %882 = vmatpush1.bf16.msra.mxu0 %v615
    %883 = vmatprep.subr.bf16.mxu0 %v614
    %884 = vmatpush1.bf16.msra.mxu0 %v613
    %885 = vmatprep.subr.bf16.mxu0 %v644
    %886 = vmatpush2.bf16.msra.mxu0 %v643
    %887 = vmatprep.subr.bf16.mxu0 %v642
    %888 = vmatpush2.bf16.msra.mxu0 %v641
    %889 = vmatprep.subr.bf16.mxu0 %v640
    %890 = vmatpush2.bf16.msra.mxu0 %v639
    %891 = vmatprep.subr.bf16.mxu0 %v638
    %892 = vmatpush2.bf16.msra.mxu0 %v637
    %893 = vmatprep.subr.bf16.mxu0 %v636
    %894 = vmatpush2.bf16.msra.mxu0 %v635
    %895 = vmatprep.subr.bf16.mxu0 %v634
    %896 = vmatpush2.bf16.msra.mxu0 %v633
    %897 = vmatprep.subr.bf16.mxu0 %v632
    %898 = vmatpush2.bf16.msra.mxu0 %v631
    %899 = vmatprep.subr.bf16.mxu0 %v630
    %900 = vmatpush2.bf16.msra.mxu0 %v629
    %901 = vmatprep.mubr.bf16.mxu0 %v82
    %902 = vmatmul.mubr.bf16.gmra.mxu0 %v81
    %v903 = vpop.f32.mrf.mxu0
    %v904 = vadd.f32 %v222, %v903
    %v905 = vpop.f32.mrf.mxu0
    %v906 = vadd.f32 %v226, %v905
    %v907 = vpop.f32.mrf.mxu0
    %v908 = vpop.f32.mrf.mxu0
    %909 = vdwg.mxu0
    %910 = vmatprep.subr.bf16.mxu0 %v660
    %911 = vmatpush1.bf16.msra.mxu0 %v659
    %912 = vmatprep.subr.bf16.mxu0 %v658
    %913 = vmatpush1.bf16.msra.mxu0 %v657
    %914 = vmatprep.subr.bf16.mxu0 %v656
    %915 = vmatpush1.bf16.msra.mxu0 %v655
    %916 = vmatprep.subr.bf16.mxu0 %v654
    %917 = vmatpush1.bf16.msra.mxu0 %v653
    %918 = vmatprep.subr.bf16.mxu0 %v652
    %919 = vmatpush1.bf16.msra.mxu0 %v651
    %920 = vmatprep.subr.bf16.mxu0 %v650
    %921 = vmatpush1.bf16.msra.mxu0 %v649
    %922 = vmatprep.subr.bf16.mxu0 %v648
    %923 = vmatpush1.bf16.msra.mxu0 %v647
    %924 = vmatprep.subr.bf16.mxu0 %v646
    %925 = vmatpush1.bf16.msra.mxu0 %v645
    %926 = vmatprep.subr.bf16.mxu0 %v676
    %927 = vmatpush2.bf16.msra.mxu0 %v675
    %928 = vmatprep.subr.bf16.mxu0 %v674
    %929 = vmatpush2.bf16.msra.mxu0 %v673
    %930 = vmatprep.subr.bf16.mxu0 %v672
    %931 = vmatpush2.bf16.msra.mxu0 %v671
    %932 = vmatprep.subr.bf16.mxu0 %v670
    %933 = vmatpush2.bf16.msra.mxu0 %v669
    %934 = vmatprep.subr.bf16.mxu0 %v668
    %935 = vmatpush2.bf16.msra.mxu0 %v667
    %936 = vmatprep.subr.bf16.mxu0 %v666
    %937 = vmatpush2.bf16.msra.mxu0 %v665
    %938 = vmatprep.subr.bf16.mxu0 %v664
    %939 = vmatpush2.bf16.msra.mxu0 %v663
    %940 = vmatprep.subr.bf16.mxu0 %v662
    %941 = vmatpush2.bf16.msra.mxu0 %v661
    %942 = vmatprep.mubr.bf16.mxu0 %v84
    %943 = vmatmul.mubr.bf16.gmra.mxu0 %v83
    %v944 = vpop.f32.mrf.mxu0
    %v945 = vadd.f32 %v904, %v944
    %v946 = vpop.f32.mrf.mxu0
    %v947 = vadd.f32 %v906, %v946
    %v948 = vpop.f32.mrf.mxu0
    %v949 = vpop.f32.mrf.mxu0
    %950 = vdwg.mxu0
    %951 = vmatprep.subr.bf16.mxu0 %v692
    %952 = vmatpush1.bf16.msra.mxu0 %v691
    %953 = vmatprep.subr.bf16.mxu0 %v690
    %954 = vmatpush1.bf16.msra.mxu0 %v689
    %955 = vmatprep.subr.bf16.mxu0 %v688
    %956 = vmatpush1.bf16.msra.mxu0 %v687
    %957 = vmatprep.subr.bf16.mxu0 %v686
    %958 = vmatpush1.bf16.msra.mxu0 %v685
    %959 = vmatprep.subr.bf16.mxu0 %v684
    %960 = vmatpush1.bf16.msra.mxu0 %v683
    %961 = vmatprep.subr.bf16.mxu0 %v682
    %962 = vmatpush1.bf16.msra.mxu0 %v681
    %963 = vmatprep.subr.bf16.mxu0 %v680
    %964 = vmatpush1.bf16.msra.mxu0 %v679
    %965 = vmatprep.subr.bf16.mxu0 %v678
    %966 = vmatpush1.bf16.msra.mxu0 %v677
    %967 = vmatprep.subr.bf16.mxu0 %v708
    %968 = vmatpush2.bf16.msra.mxu0 %v707
    %969 = vmatprep.subr.bf16.mxu0 %v706
    %970 = vmatpush2.bf16.msra.mxu0 %v705
    %971 = vmatprep.subr.bf16.mxu0 %v704
    %972 = vmatpush2.bf16.msra.mxu0 %v703
    %973 = vmatprep.subr.bf16.mxu0 %v702
    %974 = vmatpush2.bf16.msra.mxu0 %v701
    %975 = vmatprep.subr.bf16.mxu0 %v700
    %976 = vmatpush2.bf16.msra.mxu0 %v699
    %977 = vmatprep.subr.bf16.mxu0 %v698
    %978 = vmatpush2.bf16.msra.mxu0 %v697
    %979 = vmatprep.subr.bf16.mxu0 %v696
    %980 = vmatpush2.bf16.msra.mxu0 %v695
    %981 = vmatprep.subr.bf16.mxu0 %v694
    %982 = vmatpush2.bf16.msra.mxu0 %v693
    %983 = vmatprep.mubr.bf16.mxu0 %v86
    %984 = vmatmul.mubr.bf16.gmra.mxu0 %v85
    %v985 = vpop.f32.mrf.mxu0
    %v986 = vadd.f32 %v945, %v985
    %v987 = vpop.f32.mrf.mxu0
    %v988 = vadd.f32 %v947, %v987
    %v989 = vpop.f32.mrf.mxu0
    %v990 = vpop.f32.mrf.mxu0
    %991 = vdwg.mxu0
    %992 = vmatprep.subr.bf16.mxu0 %v724
    %993 = vmatpush1.bf16.msra.mxu0 %v723
    %994 = vmatprep.subr.bf16.mxu0 %v722
    %995 = vmatpush1.bf16.msra.mxu0 %v721
    %996 = vmatprep.subr.bf16.mxu0 %v720
    %997 = vmatpush1.bf16.msra.mxu0 %v719
    %998 = vmatprep.subr.bf16.mxu0 %v718
    %999 = vmatpush1.bf16.msra.mxu0 %v717
    %1000 = vmatprep.subr.bf16.mxu0 %v716
    %1001 = vmatpush1.bf16.msra.mxu0 %v715
    %1002 = vmatprep.subr.bf16.mxu0 %v714
    %1003 = vmatpush1.bf16.msra.mxu0 %v713
    %1004 = vmatprep.subr.bf16.mxu0 %v712
    %1005 = vmatpush1.bf16.msra.mxu0 %v711
    %1006 = vmatprep.subr.bf16.mxu0 %v710
    %1007 = vmatpush1.bf16.msra.mxu0 %v709
    %1008 = vmatprep.subr.bf16.mxu0 %v740
    %1009 = vmatpush2.bf16.msra.mxu0 %v739
    %1010 = vmatprep.subr.bf16.mxu0 %v738
    %1011 = vmatpush2.bf16.msra.mxu0 %v737
    %1012 = vmatprep.subr.bf16.mxu0 %v736
    %1013 = vmatpush2.bf16.msra.mxu0 %v735
    %1014 = vmatprep.subr.bf16.mxu0 %v734
    %1015 = vmatpush2.bf16.msra.mxu0 %v733
    %1016 = vmatprep.subr.bf16.mxu0 %v732
    %1017 = vmatpush2.bf16.msra.mxu0 %v731
    %1018 = vmatprep.subr.bf16.mxu0 %v730
    %1019 = vmatpush2.bf16.msra.mxu0 %v729
    %1020 = vmatprep.subr.bf16.mxu0 %v728
    %1021 = vmatpush2.bf16.msra.mxu0 %v727
    %1022 = vmatprep.subr.bf16.mxu0 %v726
    %1023 = vmatpush2.bf16.msra.mxu0 %v725
    %1024 = vmatprep.mubr.bf16.mxu0 %v88
    %1025 = vmatmul.mubr.bf16.gmra.mxu0 %v87
    %v1026 = vpop.f32.mrf.mxu0
    %v1027 = vadd.f32 %v986, %v1026
    %v1028 = vpop.f32.mrf.mxu0
    %v1029 = vadd.f32 %v988, %v1028
    %v1030 = vpop.f32.mrf.mxu0
    %v1031 = vpop.f32.mrf.mxu0
    %1032 = vdwg.mxu0
    %v1033 = vmax.f32 %v1027, 0.0
    %v1034 = vmax.f32 %v1029, 0.0
    %v1035 = vpack.c.bf16 %v1033, %v1033
    %v1036 = vpack.c.bf16 %v1034, %v1034
    %v1037 = vld [vmem:[%s3] sm:$0xff]
    %v1038 = vld [vmem:[%s3 + $0x8] sm:$0xff]
    %v1039 = vld [vmem:[%s3 + $0x10] sm:$0xff]
    %v1040 = vld [vmem:[%s3 + $0x18] sm:$0xff]
    %v1041 = vld [vmem:[%s3 + $0x20] sm:$0xff]
    %v1042 = vld [vmem:[%s3 + $0x28] sm:$0xff]
    %v1043 = vld [vmem:[%s3 + $0x30] sm:$0xff]
    %v1044 = vld [vmem:[%s3 + $0x38] sm:$0xff]
    %v1045 = vld [vmem:[%s3 + $0x40] sm:$0xff]
    %v1046 = vld [vmem:[%s3 + $0x48] sm:$0xff]
    %v1047 = vld [vmem:[%s3 + $0x50] sm:$0xff]
    %v1048 = vld [vmem:[%s3 + $0x58] sm:$0xff]
    %v1049 = vld [vmem:[%s3 + $0x60] sm:$0xff]
    %v1050 = vld [vmem:[%s3 + $0x68] sm:$0xff]
    %v1051 = vld [vmem:[%s3 + $0x70] sm:$0xff]
    %v1052 = vld [vmem:[%s3 + $0x78] sm:$0xff]
    %v1053 = vld [vmem:[%s3 + $0x80] sm:$0xff]
    %v1054 = vld [vmem:[%s3 + $0x88] sm:$0xff]
    %v1055 = vld [vmem:[%s3 + $0x90] sm:$0xff]
    %v1056 = vld [vmem:[%s3 + $0x98] sm:$0xff]
    %v1057 = vld [vmem:[%s3 + $0xa0] sm:$0xff]
    %v1058 = vld [vmem:[%s3 + $0xa8] sm:$0xff]
    %v1059 = vld [vmem:[%s3 + $0xb0] sm:$0xff]
    %v1060 = vld [vmem:[%s3 + $0xb8] sm:$0xff]
    %v1061 = vld [vmem:[%s3 + $0xc0] sm:$0xff]
    %v1062 = vld [vmem:[%s3 + $0xc8] sm:$0xff]
    %v1063 = vld [vmem:[%s3 + $0xd0] sm:$0xff]
    %v1064 = vld [vmem:[%s3 + $0xd8] sm:$0xff]
    %v1065 = vld [vmem:[%s3 + $0xe0] sm:$0xff]
    %v1066 = vld [vmem:[%s3 + $0xe8] sm:$0xff]
    %v1067 = vld [vmem:[%s3 + $0xf0] sm:$0xff]
    %v1068 = vld [vmem:[%s3 + $0xf8] sm:$0xff]
    %v1069 = vld [vmem:[%s4] sm:$0x3]
    %v1071 = vlaneseq
    %v1072 = vshrl.u32 %v1071, 7
    %v1073 = vsub.s32 0, %v1072
    %v1074 = vrot.slane %v1069, %v1073
    %v1075 = vlaneseq
    %v1076 = vshrl.u32 %v1075, 7
    %v1077 = vsub.s32 1, %v1076
    %v1078 = vrot.slane %v1069, %v1077
    %v1113 = vunpack.c.l.b16 %v1037
    %v1114 = vunpack.c.h.b16 %v1037
    %v1115 = vunpack.c.l.b16 %v1038
    %v1116 = vunpack.c.h.b16 %v1038
    %v1117 = vunpack.c.l.b16 %v1039
    %v1118 = vunpack.c.h.b16 %v1039
    %v1119 = vunpack.c.l.b16 %v1040
    %v1120 = vunpack.c.h.b16 %v1040
    %v1121 = vunpack.c.l.b16 %v1041
    %v1122 = vunpack.c.h.b16 %v1041
    %v1123 = vunpack.c.l.b16 %v1042
    %v1124 = vunpack.c.h.b16 %v1042
    %v1125 = vunpack.c.l.b16 %v1043
    %v1126 = vunpack.c.h.b16 %v1043
    %v1127 = vunpack.c.l.b16 %v1044
    %v1128 = vunpack.c.h.b16 %v1044
    %v1129 = vunpack.c.l.b16 %v1045
    %v1130 = vunpack.c.h.b16 %v1045
    %v1131 = vunpack.c.l.b16 %v1046
    %v1132 = vunpack.c.h.b16 %v1046
    %v1133 = vunpack.c.l.b16 %v1047
    %v1134 = vunpack.c.h.b16 %v1047
    %v1135 = vunpack.c.l.b16 %v1048
    %v1136 = vunpack.c.h.b16 %v1048
    %v1137 = vunpack.c.l.b16 %v1049
    %v1138 = vunpack.c.h.b16 %v1049
    %v1139 = vunpack.c.l.b16 %v1050
    %v1140 = vunpack.c.h.b16 %v1050
    %v1141 = vunpack.c.l.b16 %v1051
    %v1142 = vunpack.c.h.b16 %v1051
    %v1143 = vunpack.c.l.b16 %v1052
    %v1144 = vunpack.c.h.b16 %v1052
    %v1145 = vunpack.c.l.b16 %v1053
    %v1146 = vunpack.c.h.b16 %v1053
    %v1147 = vunpack.c.l.b16 %v1054
    %v1148 = vunpack.c.h.b16 %v1054
    %v1149 = vunpack.c.l.b16 %v1055
    %v1150 = vunpack.c.h.b16 %v1055
    %v1151 = vunpack.c.l.b16 %v1056
    %v1152 = vunpack.c.h.b16 %v1056
    %v1153 = vunpack.c.l.b16 %v1057
    %v1154 = vunpack.c.h.b16 %v1057
    %v1155 = vunpack.c.l.b16 %v1058
    %v1156 = vunpack.c.h.b16 %v1058
    %v1157 = vunpack.c.l.b16 %v1059
    %v1158 = vunpack.c.h.b16 %v1059
    %v1159 = vunpack.c.l.b16 %v1060
    %v1160 = vunpack.c.h.b16 %v1060
    %v1161 = vunpack.c.l.b16 %v1061
    %v1162 = vunpack.c.h.b16 %v1061
    %v1163 = vunpack.c.l.b16 %v1062
    %v1164 = vunpack.c.h.b16 %v1062
    %v1165 = vunpack.c.l.b16 %v1063
    %v1166 = vunpack.c.h.b16 %v1063
    %v1167 = vunpack.c.l.b16 %v1064
    %v1168 = vunpack.c.h.b16 %v1064
    %v1169 = vunpack.c.l.b16 %v1065
    %v1170 = vunpack.c.h.b16 %v1065
    %v1171 = vunpack.c.l.b16 %v1066
    %v1172 = vunpack.c.h.b16 %v1066
    %v1173 = vunpack.c.l.b16 %v1067
    %v1174 = vunpack.c.h.b16 %v1067
    %v1175 = vunpack.c.l.b16 %v1068
    %v1176 = vunpack.c.h.b16 %v1068
    %v1177 = vpack.c.b16 %v1115, %v1113
    %v1178 = vpack.c.b16 %v1116, %v1114
    %v1179 = vpack.c.b16 %v1119, %v1117
    %v1180 = vpack.c.b16 %v1120, %v1118
    %v1181 = vpack.c.b16 %v1123, %v1121
    %v1182 = vpack.c.b16 %v1124, %v1122
    %v1183 = vpack.c.b16 %v1127, %v1125
    %v1184 = vpack.c.b16 %v1128, %v1126
    %v1185 = vpack.c.b16 %v1131, %v1129
    %v1186 = vpack.c.b16 %v1132, %v1130
    %v1187 = vpack.c.b16 %v1135, %v1133
    %v1188 = vpack.c.b16 %v1136, %v1134
    %v1189 = vpack.c.b16 %v1139, %v1137
    %v1190 = vpack.c.b16 %v1140, %v1138
    %v1191 = vpack.c.b16 %v1143, %v1141
    %v1192 = vpack.c.b16 %v1144, %v1142
    %v1193 = vpack.c.b16 %v1147, %v1145
    %v1194 = vpack.c.b16 %v1148, %v1146
    %v1195 = vpack.c.b16 %v1151, %v1149
    %v1196 = vpack.c.b16 %v1152, %v1150
    %v1197 = vpack.c.b16 %v1155, %v1153
    %v1198 = vpack.c.b16 %v1156, %v1154
    %v1199 = vpack.c.b16 %v1159, %v1157
    %v1200 = vpack.c.b16 %v1160, %v1158
    %v1201 = vpack.c.b16 %v1163, %v1161
    %v1202 = vpack.c.b16 %v1164, %v1162
    %v1203 = vpack.c.b16 %v1167, %v1165
    %v1204 = vpack.c.b16 %v1168, %v1166
    %v1205 = vpack.c.b16 %v1171, %v1169
    %v1206 = vpack.c.b16 %v1172, %v1170
    %v1207 = vpack.c.b16 %v1175, %v1173
    %v1208 = vpack.c.b16 %v1176, %v1174
    %1241 = vmatprep.subr.bf16.mxu0 %v1192
    %1242 = vmatpush1.bf16.msra.mxu0 %v1191
    %1243 = vmatprep.subr.bf16.mxu0 %v1190
    %1244 = vmatpush1.bf16.msra.mxu0 %v1189
    %1245 = vmatprep.subr.bf16.mxu0 %v1188
    %1246 = vmatpush1.bf16.msra.mxu0 %v1187
    %1247 = vmatprep.subr.bf16.mxu0 %v1186
    %1248 = vmatpush1.bf16.msra.mxu0 %v1185
    %1249 = vmatprep.subr.bf16.mxu0 %v1184
    %1250 = vmatpush1.bf16.msra.mxu0 %v1183
    %1251 = vmatprep.subr.bf16.mxu0 %v1182
    %1252 = vmatpush1.bf16.msra.mxu0 %v1181
    %1253 = vmatprep.subr.bf16.mxu0 %v1180
    %1254 = vmatpush1.bf16.msra.mxu0 %v1179
    %1255 = vmatprep.subr.bf16.mxu0 %v1178
    %1256 = vmatpush1.bf16.msra.mxu0 %v1177
    %1257 = vmatprep.subr.bf16.mxu0 %v1208
    %1258 = vmatpush2.bf16.msra.mxu0 %v1207
    %1259 = vmatprep.subr.bf16.mxu0 %v1206
    %1260 = vmatpush2.bf16.msra.mxu0 %v1205
    %1261 = vmatprep.subr.bf16.mxu0 %v1204
    %1262 = vmatpush2.bf16.msra.mxu0 %v1203
    %1263 = vmatprep.subr.bf16.mxu0 %v1202
    %1264 = vmatpush2.bf16.msra.mxu0 %v1201
    %1265 = vmatprep.subr.bf16.mxu0 %v1200
    %1266 = vmatpush2.bf16.msra.mxu0 %v1199
    %1267 = vmatprep.subr.bf16.mxu0 %v1198
    %1268 = vmatpush2.bf16.msra.mxu0 %v1197
    %1269 = vmatprep.subr.bf16.mxu0 %v1196
    %1270 = vmatpush2.bf16.msra.mxu0 %v1195
    %1271 = vmatprep.subr.bf16.mxu0 %v1194
    %1272 = vmatpush2.bf16.msra.mxu0 %v1193
    %1273 = vmatprep.mubr.bf16.mxu0 %v1036
    %1274 = vmatmul.mubr.bf16.gmra.mxu0 %v1035
    %v1275 = vpop.f32.mrf.mxu0
    %v1276 = vadd.f32 %v1074, %v1275
    %v1277 = vpop.f32.mrf.mxu0
    %v1278 = vadd.f32 %v1078, %v1277
    %v1279 = vpop.f32.mrf.mxu0
    %v1280 = vpop.f32.mrf.mxu0
    %1281 = vdwg.mxu0
    %v1282 = vmax.f32 %v1276, 0.0
    %v1283 = vmax.f32 %v1278, 0.0
    %v1284 = vpack.c.bf16 %v1282, %v1282
    %v1285 = vpack.c.bf16 %v1283, %v1283
    %v1286 = vld [vmem:[#allocation7] sm:$0xff]
    %v1287 = vld [vmem:[#allocation7 + $0x8] sm:$0xff]
    %v1288 = vld [vmem:[#allocation7 + $0x10] sm:$0xff]
    %v1289 = vld [vmem:[#allocation7 + $0x18] sm:$0xff]
    %v1290 = vld [vmem:[#allocation7 + $0x20] sm:$0xff]
    %v1291 = vld [vmem:[#allocation7 + $0x28] sm:$0xff]
    %v1292 = vld [vmem:[#allocation7 + $0x30] sm:$0xff]
    %v1293 = vld [vmem:[#allocation7 + $0x38] sm:$0xff]
    %v1294 = vld [vmem:[#allocation7 + $0x40] sm:$0xff]
    %v1295 = vld [vmem:[#allocation7 + $0x48] sm:$0xff]
    %v1296 = vld [vmem:[#allocation7 + $0x50] sm:$0xff]
    %v1297 = vld [vmem:[#allocation7 + $0x58] sm:$0xff]
    %v1298 = vld [vmem:[#allocation7 + $0x60] sm:$0xff]
    %v1299 = vld [vmem:[#allocation7 + $0x68] sm:$0xff]
    %v1300 = vld [vmem:[#allocation7 + $0x70] sm:$0xff]
    %v1301 = vld [vmem:[#allocation7 + $0x78] sm:$0xff]
    %v1302 = vld [vmem:[#allocation7 + $0x80] sm:$0xff]
    %v1303 = vld [vmem:[#allocation7 + $0x88] sm:$0xff]
    %v1304 = vld [vmem:[#allocation7 + $0x90] sm:$0xff]
    %v1305 = vld [vmem:[#allocation7 + $0x98] sm:$0xff]
    %v1306 = vld [vmem:[#allocation7 + $0xa0] sm:$0xff]
    %v1307 = vld [vmem:[#allocation7 + $0xa8] sm:$0xff]
    %v1308 = vld [vmem:[#allocation7 + $0xb0] sm:$0xff]
    %v1309 = vld [vmem:[#allocation7 + $0xb8] sm:$0xff]
    %v1310 = vld [vmem:[#allocation7 + $0xc0] sm:$0xff]
    %v1311 = vld [vmem:[#allocation7 + $0xc8] sm:$0xff]
    %v1312 = vld [vmem:[#allocation7 + $0xd0] sm:$0xff]
    %v1313 = vld [vmem:[#allocation7 + $0xd8] sm:$0xff]
    %v1314 = vld [vmem:[#allocation7 + $0xe0] sm:$0xff]
    %v1315 = vld [vmem:[#allocation7 + $0xe8] sm:$0xff]
    %v1316 = vld [vmem:[#allocation7 + $0xf0] sm:$0xff]
    %v1317 = vld [vmem:[#allocation7 + $0xf8] sm:$0xff]
    %v1318 = vld [vmem:[%s6] sm:$0x3]
    %v1320 = vlaneseq
    %v1321 = vshrl.u32 %v1320, 7
    %v1322 = vsub.s32 0, %v1321
    %v1323 = vrot.slane %v1318, %v1322
    %v1324 = vlaneseq
    %v1325 = vshrl.u32 %v1324, 7
    %v1326 = vsub.s32 1, %v1325
    %v1327 = vrot.slane %v1318, %v1326
    %v1362 = vunpack.c.l.b16 %v1286
    %v1363 = vunpack.c.h.b16 %v1286
    %v1364 = vunpack.c.l.b16 %v1287
    %v1365 = vunpack.c.h.b16 %v1287
    %v1366 = vunpack.c.l.b16 %v1288
    %v1367 = vunpack.c.h.b16 %v1288
    %v1368 = vunpack.c.l.b16 %v1289
    %v1369 = vunpack.c.h.b16 %v1289
    %v1370 = vunpack.c.l.b16 %v1290
    %v1371 = vunpack.c.h.b16 %v1290
    %v1372 = vunpack.c.l.b16 %v1291
    %v1373 = vunpack.c.h.b16 %v1291
    %v1374 = vunpack.c.l.b16 %v1292
    %v1375 = vunpack.c.h.b16 %v1292
    %v1376 = vunpack.c.l.b16 %v1293
    %v1377 = vunpack.c.h.b16 %v1293
    %v1378 = vunpack.c.l.b16 %v1294
    %v1379 = vunpack.c.h.b16 %v1294
    %v1380 = vunpack.c.l.b16 %v1295
    %v1381 = vunpack.c.h.b16 %v1295
    %v1382 = vunpack.c.l.b16 %v1296
    %v1383 = vunpack.c.h.b16 %v1296
    %v1384 = vunpack.c.l.b16 %v1297
    %v1385 = vunpack.c.h.b16 %v1297
    %v1386 = vunpack.c.l.b16 %v1298
    %v1387 = vunpack.c.h.b16 %v1298
    %v1388 = vunpack.c.l.b16 %v1299
    %v1389 = vunpack.c.h.b16 %v1299
    %v1390 = vunpack.c.l.b16 %v1300
    %v1391 = vunpack.c.h.b16 %v1300
    %v1392 = vunpack.c.l.b16 %v1301
    %v1393 = vunpack.c.h.b16 %v1301
    %v1394 = vunpack.c.l.b16 %v1302
    %v1395 = vunpack.c.h.b16 %v1302
    %v1396 = vunpack.c.l.b16 %v1303
    %v1397 = vunpack.c.h.b16 %v1303
    %v1398 = vunpack.c.l.b16 %v1304
    %v1399 = vunpack.c.h.b16 %v1304
    %v1400 = vunpack.c.l.b16 %v1305
    %v1401 = vunpack.c.h.b16 %v1305
    %v1402 = vunpack.c.l.b16 %v1306
    %v1403 = vunpack.c.h.b16 %v1306
    %v1404 = vunpack.c.l.b16 %v1307
    %v1405 = vunpack.c.h.b16 %v1307
    %v1406 = vunpack.c.l.b16 %v1308
    %v1407 = vunpack.c.h.b16 %v1308
    %v1408 = vunpack.c.l.b16 %v1309
    %v1409 = vunpack.c.h.b16 %v1309
    %v1410 = vunpack.c.l.b16 %v1310
    %v1411 = vunpack.c.h.b16 %v1310
    %v1412 = vunpack.c.l.b16 %v1311
    %v1413 = vunpack.c.h.b16 %v1311
    %v1414 = vunpack.c.l.b16 %v1312
    %v1415 = vunpack.c.h.b16 %v1312
    %v1416 = vunpack.c.l.b16 %v1313
    %v1417 = vunpack.c.h.b16 %v1313
    %v1418 = vunpack.c.l.b16 %v1314
    %v1419 = vunpack.c.h.b16 %v1314
    %v1420 = vunpack.c.l.b16 %v1315
    %v1421 = vunpack.c.h.b16 %v1315
    %v1422 = vunpack.c.l.b16 %v1316
    %v1423 = vunpack.c.h.b16 %v1316
    %v1424 = vunpack.c.l.b16 %v1317
    %v1425 = vunpack.c.h.b16 %v1317
    %v1426 = vpack.c.b16 %v1364, %v1362
    %v1427 = vpack.c.b16 %v1365, %v1363
    %v1428 = vpack.c.b16 %v1368, %v1366
    %v1429 = vpack.c.b16 %v1369, %v1367
    %v1430 = vpack.c.b16 %v1372, %v1370
    %v1431 = vpack.c.b16 %v1373, %v1371
    %v1432 = vpack.c.b16 %v1376, %v1374
    %v1433 = vpack.c.b16 %v1377, %v1375
    %v1434 = vpack.c.b16 %v1380, %v1378
    %v1435 = vpack.c.b16 %v1381, %v1379
    %v1436 = vpack.c.b16 %v1384, %v1382
    %v1437 = vpack.c.b16 %v1385, %v1383
    %v1438 = vpack.c.b16 %v1388, %v1386
    %v1439 = vpack.c.b16 %v1389, %v1387
    %v1440 = vpack.c.b16 %v1392, %v1390
    %v1441 = vpack.c.b16 %v1393, %v1391
    %v1442 = vpack.c.b16 %v1396, %v1394
    %v1443 = vpack.c.b16 %v1397, %v1395
    %v1444 = vpack.c.b16 %v1400, %v1398
    %v1445 = vpack.c.b16 %v1401, %v1399
    %v1446 = vpack.c.b16 %v1404, %v1402
    %v1447 = vpack.c.b16 %v1405, %v1403
    %v1448 = vpack.c.b16 %v1408, %v1406
    %v1449 = vpack.c.b16 %v1409, %v1407
    %v1450 = vpack.c.b16 %v1412, %v1410
    %v1451 = vpack.c.b16 %v1413, %v1411
    %v1452 = vpack.c.b16 %v1416, %v1414
    %v1453 = vpack.c.b16 %v1417, %v1415
    %v1454 = vpack.c.b16 %v1420, %v1418
    %v1455 = vpack.c.b16 %v1421, %v1419
    %v1456 = vpack.c.b16 %v1424, %v1422
    %v1457 = vpack.c.b16 %v1425, %v1423
    %1490 = vmatprep.subr.bf16.mxu0 %v1441
    %1491 = vmatpush1.bf16.msra.mxu0 %v1440
    %1492 = vmatprep.subr.bf16.mxu0 %v1439
    %1493 = vmatpush1.bf16.msra.mxu0 %v1438
    %1494 = vmatprep.subr.bf16.mxu0 %v1437
    %1495 = vmatpush1.bf16.msra.mxu0 %v1436
    %1496 = vmatprep.subr.bf16.mxu0 %v1435
    %1497 = vmatpush1.bf16.msra.mxu0 %v1434
    %1498 = vmatprep.subr.bf16.mxu0 %v1433
    %1499 = vmatpush1.bf16.msra.mxu0 %v1432
    %1500 = vmatprep.subr.bf16.mxu0 %v1431
    %1501 = vmatpush1.bf16.msra.mxu0 %v1430
    %1502 = vmatprep.subr.bf16.mxu0 %v1429
    %1503 = vmatpush1.bf16.msra.mxu0 %v1428
    %1504 = vmatprep.subr.bf16.mxu0 %v1427
    %1505 = vmatpush1.bf16.msra.mxu0 %v1426
    %1506 = vmatprep.subr.bf16.mxu0 %v1457
    %1507 = vmatpush2.bf16.msra.mxu0 %v1456
    %1508 = vmatprep.subr.bf16.mxu0 %v1455
    %1509 = vmatpush2.bf16.msra.mxu0 %v1454
    %1510 = vmatprep.subr.bf16.mxu0 %v1453
    %1511 = vmatpush2.bf16.msra.mxu0 %v1452
    %1512 = vmatprep.subr.bf16.mxu0 %v1451
    %1513 = vmatpush2.bf16.msra.mxu0 %v1450
    %1514 = vmatprep.subr.bf16.mxu0 %v1449
    %1515 = vmatpush2.bf16.msra.mxu0 %v1448
    %1516 = vmatprep.subr.bf16.mxu0 %v1447
    %1517 = vmatpush2.bf16.msra.mxu0 %v1446
    %1518 = vmatprep.subr.bf16.mxu0 %v1445
    %1519 = vmatpush2.bf16.msra.mxu0 %v1444
    %1520 = vmatprep.subr.bf16.mxu0 %v1443
    %1521 = vmatpush2.bf16.msra.mxu0 %v1442
    %1522 = vmatprep.mubr.bf16.mxu0 %v1285
    %1523 = vmatmul.mubr.bf16.gmra.mxu0 %v1284
    %v1524 = vpop.f32.mrf.mxu0
    %v1525 = vadd.f32 %v1323, %v1524
    %v1526 = vpop.f32.mrf.mxu0
    %v1527 = vadd.f32 %v1327, %v1526
    %v1528 = vpop.f32.mrf.mxu0
    %v1529 = vpop.f32.mrf.mxu0
    %1530 = vdwg.mxu0
    %v1531 = vtanh.pop %v1525
    %v1532 = vtanh.pop %v1527
    %v1533 = vpack.c.bf16 %v1531, %v1531
    %v1534 = vpack.c.bf16 %v1532, %v1532
    %v1535 = vld [vmem:[%s7] sm:$0xf]
    %v1536 = vld [vmem:[%s7 + $0x4] sm:$0xf]
    %v1537 = vld [vmem:[%s7 + $0x8] sm:$0xf]
    %v1538 = vld [vmem:[%s7 + $0xc] sm:$0xf]
    %v1539 = vld [vmem:[%s7 + $0x10] sm:$0xf]
    %v1540 = vld [vmem:[%s7 + $0x14] sm:$0xf]
    %v1541 = vld [vmem:[%s7 + $0x18] sm:$0xf]
    %v1542 = vld [vmem:[%s7 + $0x1c] sm:$0xf]
    %v1543 = vld [vmem:[%s7 + $0x20] sm:$0xf]
    %v1544 = vld [vmem:[%s7 + $0x24] sm:$0xf]
    %v1545 = vld [vmem:[%s7 + $0x28] sm:$0xf]
    %v1546 = vld [vmem:[%s7 + $0x2c] sm:$0xf]
    %v1547 = vld [vmem:[%s7 + $0x30] sm:$0xf]
    %v1548 = vld [vmem:[%s7 + $0x34] sm:$0xf]
    %v1549 = vld [vmem:[%s7 + $0x38] sm:$0xf]
    %v1550 = vld [vmem:[%s7 + $0x3c] sm:$0xf]
    %v1551 = vld [vmem:[%s7 + $0x40] sm:$0xf]
    %v1552 = vld [vmem:[%s7 + $0x44] sm:$0xf]
    %v1553 = vld [vmem:[%s7 + $0x48] sm:$0xf]
    %v1554 = vld [vmem:[%s7 + $0x4c] sm:$0xf]
    %v1555 = vld [vmem:[%s7 + $0x50] sm:$0xf]
    %v1556 = vld [vmem:[%s7 + $0x54] sm:$0xf]
    %v1557 = vld [vmem:[%s7 + $0x58] sm:$0xf]
    %v1558 = vld [vmem:[%s7 + $0x5c] sm:$0xf]
    %v1559 = vld [vmem:[%s7 + $0x60] sm:$0xf]
    %v1560 = vld [vmem:[%s7 + $0x64] sm:$0xf]
    %v1561 = vld [vmem:[%s7 + $0x68] sm:$0xf]
    %v1562 = vld [vmem:[%s7 + $0x6c] sm:$0xf]
    %v1563 = vld [vmem:[%s7 + $0x70] sm:$0xf]
    %v1564 = vld [vmem:[%s7 + $0x74] sm:$0xf]
    %v1565 = vld [vmem:[%s7 + $0x78] sm:$0xf]
    %v1566 = vld [vmem:[%s7 + $0x7c] sm:$0xf]
    %v1567 = vld [vmem:[%s7 + $0x80] sm:$0xf]
    %v1568 = vld [vmem:[%s7 + $0x84] sm:$0xf]
    %v1569 = vld [vmem:[%s7 + $0x88] sm:$0xf]
    %v1570 = vld [vmem:[%s7 + $0x8c] sm:$0xf]
    %v1571 = vld [vmem:[%s7 + $0x90] sm:$0xf]
    %v1572 = vld [vmem:[%s7 + $0x94] sm:$0xf]
    %v1573 = vld [vmem:[%s7 + $0x98] sm:$0xf]
    %v1574 = vld [vmem:[%s7 + $0x9c] sm:$0xf]
    %v1575 = vld [vmem:[%s7 + $0xa0] sm:$0xf]
    %v1576 = vld [vmem:[%s7 + $0xa4] sm:$0xf]
    %v1577 = vld [vmem:[%s7 + $0xa8] sm:$0xf]
    %v1578 = vld [vmem:[%s7 + $0xac] sm:$0xf]
    %v1579 = vld [vmem:[%s7 + $0xb0] sm:$0xf]
    %v1580 = vld [vmem:[%s7 + $0xb4] sm:$0xf]
    %v1581 = vld [vmem:[%s7 + $0xb8] sm:$0xf]
    %v1582 = vld [vmem:[%s7 + $0xbc] sm:$0xf]
    %v1583 = vld [vmem:[%s7 + $0xc0] sm:$0xf]
    %v1584 = vld [vmem:[%s7 + $0xc4] sm:$0xf]
    %v1585 = vld [vmem:[%s7 + $0xc8] sm:$0xf]
    %v1586 = vld [vmem:[%s7 + $0xcc] sm:$0xf]
    %v1587 = vld [vmem:[%s7 + $0xd0] sm:$0xf]
    %v1588 = vld [vmem:[%s7 + $0xd4] sm:$0xf]
    %v1589 = vld [vmem:[%s7 + $0xd8] sm:$0xf]
    %v1590 = vld [vmem:[%s7 + $0xdc] sm:$0xf]
    %v1591 = vld [vmem:[%s7 + $0xe0] sm:$0xf]
    %v1592 = vld [vmem:[%s7 + $0xe4] sm:$0xf]
    %v1593 = vld [vmem:[%s7 + $0xe8] sm:$0xf]
    %v1594 = vld [vmem:[%s7 + $0xec] sm:$0xf]
    %v1595 = vld [vmem:[%s7 + $0xf0] sm:$0xf]
    %v1596 = vld [vmem:[%s7 + $0xf4] sm:$0xf]
    %v1597 = vld [vmem:[%s7 + $0xf8] sm:$0xf]
    %v1598 = vld [vmem:[%s7 + $0xfc] sm:$0xf]
    %v1631 = vunpack.c.l.b16 %v1567
    %v1632 = vunpack.c.l.b16 %v1568
    %v1633 = vunpack.c.l.b16 %v1569
    %v1634 = vunpack.c.l.b16 %v1570
    %v1635 = vunpack.c.l.b16 %v1571
    %v1636 = vunpack.c.l.b16 %v1572
    %v1637 = vunpack.c.l.b16 %v1573
    %v1638 = vunpack.c.l.b16 %v1574
    %v1639 = vunpack.c.l.b16 %v1575
    %v1640 = vunpack.c.l.b16 %v1576
    %v1641 = vunpack.c.l.b16 %v1577
    %v1642 = vunpack.c.l.b16 %v1578
    %v1643 = vunpack.c.l.b16 %v1579
    %v1644 = vunpack.c.l.b16 %v1580
    %v1645 = vunpack.c.l.b16 %v1581
    %v1646 = vunpack.c.l.b16 %v1582
    %v1647 = vunpack.c.l.b16 %v1583
    %v1648 = vunpack.c.l.b16 %v1584
    %v1649 = vunpack.c.l.b16 %v1585
    %v1650 = vunpack.c.l.b16 %v1586
    %v1651 = vunpack.c.l.b16 %v1587
    %v1652 = vunpack.c.l.b16 %v1588
    %v1653 = vunpack.c.l.b16 %v1589
    %v1654 = vunpack.c.l.b16 %v1590
    %v1655 = vunpack.c.l.b16 %v1591
    %v1656 = vunpack.c.l.b16 %v1592
    %v1657 = vunpack.c.l.b16 %v1593
    %v1658 = vunpack.c.l.b16 %v1594
    %v1659 = vunpack.c.l.b16 %v1595
    %v1660 = vunpack.c.l.b16 %v1596
    %v1661 = vunpack.c.l.b16 %v1597
    %v1662 = vunpack.c.l.b16 %v1598
    %v1663 = vpack.c.b16 %v1632, %v1631
    %v1664 = vpack.c.b16 %v1634, %v1633
    %v1665 = vpack.c.b16 %v1636, %v1635
    %v1666 = vpack.c.b16 %v1638, %v1637
    %v1667 = vpack.c.b16 %v1640, %v1639
    %v1668 = vpack.c.b16 %v1642, %v1641
    %v1669 = vpack.c.b16 %v1644, %v1643
    %v1670 = vpack.c.b16 %v1646, %v1645
    %v1671 = vpack.c.b16 %v1648, %v1647
    %v1672 = vpack.c.b16 %v1650, %v1649
    %v1673 = vpack.c.b16 %v1652, %v1651
    %v1674 = vpack.c.b16 %v1654, %v1653
    %v1675 = vpack.c.b16 %v1656, %v1655
    %v1676 = vpack.c.b16 %v1658, %v1657
    %v1677 = vpack.c.b16 %v1660, %v1659
    %v1678 = vpack.c.b16 %v1662, %v1661
    %1695 = vmatprep.subr.bf16.mxu0 0
    %1696 = vmatpush1.bf16.msra.mxu0 %v1670
    %1697 = vmatprep.subr.bf16.mxu0 0
    %1698 = vmatpush1.bf16.msra.mxu0 %v1669
    %1699 = vmatprep.subr.bf16.mxu0 0
    %1700 = vmatpush1.bf16.msra.mxu0 %v1668
    %1701 = vmatprep.subr.bf16.mxu0 0
    %1702 = vmatpush1.bf16.msra.mxu0 %v1667
    %1703 = vmatprep.subr.bf16.mxu0 0
    %1704 = vmatpush1.bf16.msra.mxu0 %v1666
    %1705 = vmatprep.subr.bf16.mxu0 0
    %1706 = vmatpush1.bf16.msra.mxu0 %v1665
    %1707 = vmatprep.subr.bf16.mxu0 0
    %1708 = vmatpush1.bf16.msra.mxu0 %v1664
    %1709 = vmatprep.subr.bf16.mxu0 0
    %1710 = vmatpush1.bf16.msra.mxu0 %v1663
    %1711 = vmatprep.subr.bf16.mxu0 0
    %1712 = vmatpush2.bf16.msra.mxu0 %v1678
    %1713 = vmatprep.subr.bf16.mxu0 0
    %1714 = vmatpush2.bf16.msra.mxu0 %v1677
    %1715 = vmatprep.subr.bf16.mxu0 0
    %1716 = vmatpush2.bf16.msra.mxu0 %v1676
    %1717 = vmatprep.subr.bf16.mxu0 0
    %1718 = vmatpush2.bf16.msra.mxu0 %v1675
    %1719 = vmatprep.subr.bf16.mxu0 0
    %1720 = vmatpush2.bf16.msra.mxu0 %v1674
    %1721 = vmatprep.subr.bf16.mxu0 0
    %1722 = vmatpush2.bf16.msra.mxu0 %v1673
    %1723 = vmatprep.subr.bf16.mxu0 0
    %1724 = vmatpush2.bf16.msra.mxu0 %v1672
    %1725 = vmatprep.subr.bf16.mxu0 0
    %1726 = vmatpush2.bf16.msra.mxu0 %v1671
    %1727 = vmatprep.mubr.bf16.mxu0 %v1534
    %1728 = vmatmul.mubr.bf16.gmra.mxu0 %v1533
    %v1729 = vpop.f32.mrf.mxu0
    %v1730 = vadd.f32 0.0, %v1729
    %v1731 = vpop.f32.mrf.mxu0
    %v1732 = vpop.f32.mrf.mxu0
    %v1733 = vpop.f32.mrf.mxu0
    %1734 = vdwg.mxu0
    %v1767 = vunpack.c.l.b16 %v1535
    %v1768 = vunpack.c.l.b16 %v1536
    %v1769 = vunpack.c.l.b16 %v1537
    %v1770 = vunpack.c.l.b16 %v1538
    %v1771 = vunpack.c.l.b16 %v1539
    %v1772 = vunpack.c.l.b16 %v1540
    %v1773 = vunpack.c.l.b16 %v1541
    %v1774 = vunpack.c.l.b16 %v1542
    %v1775 = vunpack.c.l.b16 %v1543
    %v1776 = vunpack.c.l.b16 %v1544
    %v1777 = vunpack.c.l.b16 %v1545
    %v1778 = vunpack.c.l.b16 %v1546
    %v1779 = vunpack.c.l.b16 %v1547
    %v1780 = vunpack.c.l.b16 %v1548
    %v1781 = vunpack.c.l.b16 %v1549
    %v1782 = vunpack.c.l.b16 %v1550
    %v1783 = vunpack.c.l.b16 %v1551
    %v1784 = vunpack.c.l.b16 %v1552
    %v1785 = vunpack.c.l.b16 %v1553
    %v1786 = vunpack.c.l.b16 %v1554
    %v1787 = vunpack.c.l.b16 %v1555
    %v1788 = vunpack.c.l.b16 %v1556
    %v1789 = vunpack.c.l.b16 %v1557
    %v1790 = vunpack.c.l.b16 %v1558
    %v1791 = vunpack.c.l.b16 %v1559
    %v1792 = vunpack.c.l.b16 %v1560
    %v1793 = vunpack.c.l.b16 %v1561
    %v1794 = vunpack.c.l.b16 %v1562
    %v1795 = vunpack.c.l.b16 %v1563
    %v1796 = vunpack.c.l.b16 %v1564
    %v1797 = vunpack.c.l.b16 %v1565
    %v1798 = vunpack.c.l.b16 %v1566
    %v1799 = vpack.c.b16 %v1768, %v1767
    %v1800 = vpack.c.b16 %v1770, %v1769
    %v1801 = vpack.c.b16 %v1772, %v1771
    %v1802 = vpack.c.b16 %v1774, %v1773
    %v1803 = vpack.c.b16 %v1776, %v1775
    %v1804 = vpack.c.b16 %v1778, %v1777
    %v1805 = vpack.c.b16 %v1780, %v1779
    %v1806 = vpack.c.b16 %v1782, %v1781
    %v1807 = vpack.c.b16 %v1784, %v1783
    %v1808 = vpack.c.b16 %v1786, %v1785
    %v1809 = vpack.c.b16 %v1788, %v1787
    %v1810 = vpack.c.b16 %v1790, %v1789
    %v1811 = vpack.c.b16 %v1792, %v1791
    %v1812 = vpack.c.b16 %v1794, %v1793
    %v1813 = vpack.c.b16 %v1796, %v1795
    %v1814 = vpack.c.b16 %v1798, %v1797
    %1831 = vmatprep.subr.bf16.mxu0 0
    %1832 = vmatpush1.bf16.msra.mxu0 %v1806
    %1833 = vmatprep.subr.bf16.mxu0 0
    %1834 = vmatpush1.bf16.msra.mxu0 %v1805
    %1835 = vmatprep.subr.bf16.mxu0 0
    %1836 = vmatpush1.bf16.msra.mxu0 %v1804
    %1837 = vmatprep.subr.bf16.mxu0 0
    %1838 = vmatpush1.bf16.msra.mxu0 %v1803
    %1839 = vmatprep.subr.bf16.mxu0 0
    %1840 = vmatpush1.bf16.msra.mxu0 %v1802
    %1841 = vmatprep.subr.bf16.mxu0 0
    %1842 = vmatpush1.bf16.msra.mxu0 %v1801
    %1843 = vmatprep.subr.bf16.mxu0 0
    %1844 = vmatpush1.bf16.msra.mxu0 %v1800
    %1845 = vmatprep.subr.bf16.mxu0 0
    %1846 = vmatpush1.bf16.msra.mxu0 %v1799
    %1847 = vmatprep.subr.bf16.mxu0 0
    %1848 = vmatpush2.bf16.msra.mxu0 %v1814
    %1849 = vmatprep.subr.bf16.mxu0 0
    %1850 = vmatpush2.bf16.msra.mxu0 %v1813
    %1851 = vmatprep.subr.bf16.mxu0 0
    %1852 = vmatpush2.bf16.msra.mxu0 %v1812
    %1853 = vmatprep.subr.bf16.mxu0 0
    %1854 = vmatpush2.bf16.msra.mxu0 %v1811
    %1855 = vmatprep.subr.bf16.mxu0 0
    %1856 = vmatpush2.bf16.msra.mxu0 %v1810
    %1857 = vmatprep.subr.bf16.mxu0 0
    %1858 = vmatpush2.bf16.msra.mxu0 %v1809
    %1859 = vmatprep.subr.bf16.mxu0 0
    %1860 = vmatpush2.bf16.msra.mxu0 %v1808
    %1861 = vmatprep.subr.bf16.mxu0 0
    %1862 = vmatpush2.bf16.msra.mxu0 %v1807
    %1863 = vmatprep.mubr.bf16.mxu0 %v1285
    %1864 = vmatmul.mubr.bf16.gmra.mxu0 %v1284
    %v1865 = vpop.f32.mrf.mxu0
    %v1866 = vadd.f32 %v1730, %v1865
    %v1867 = vpop.f32.mrf.mxu0
    %v1868 = vpop.f32.mrf.mxu0
    %v1869 = vpop.f32.mrf.mxu0
    %1870 = vdwg.mxu0
    %v1871 = vld [vmem:[%s8] sm:$0x1]
    %v1873 = vlaneseq
    %v1874 = vshrl.u32 %v1873, 7
    %v1875 = vsub.s32 0, %v1874
    %v1876 = vrot.slane %v1871, %v1875
    %v1878 = vadd.f32 %v1866, %v1876
    %vm1879 = vcmask 56320
    %1880 = vst.msk [vmem:[#allocation8] sm:$0xff] %vm1879, %v1878
    // Predicated region
    $region50: #{tpu_custom_call.1} parent=1 // pred_check
      _
    $region51: #{tpu_custom_call.1} parent=1 // pred_check_branch
      %1882 = sbr.rel (0) target = $region53
    $region52: #{tpu_custom_call.1} parent=1 // pred_region
      %s1884 = ssub.s32 128, 128
      %1885 = vsyncadd [#allocation4], %s1884
      %s1887 = sshll.u32 [#allocation8], 4
      %s1888 = int_to_ptr.vmem [resolvable:$true] %s1887
      %1890 = dma.vmem_to_hbm [thread:$0]  %s1888, 128, %s9, [#allocation4]
    $region53: #{tpu_custom_call.1} parent=1 // pred_fallthru
      _
    // Predicated region
    $region54: #{tpu_custom_call.1} parent=1 // pred_check
      _
    $region55: #{tpu_custom_call.1} parent=1 // pred_check_branch
      %1892 = sbr.rel (0) target = $region57
    $region56: #{tpu_custom_call.1} parent=1 // pred_region
      %1893 = dma.done [#allocation4], 128
    $region57: #{tpu_custom_call.1} parent=1 // pred_fallthru
      _
    %1894 = vsyncpa [#allocation3], 1
    %1895 = vsyncpa [#allocation6], 1
    %1896 = vsyncpa [#allocation4], 1

</llo_original>
